<compile_context>
chip_gen: v5e
topology: v5e:2x2
jax: 0.10.0
libtpu: 0.0.40
codegen_flags: <defaults>
</compile_context>

<pallas_src>
import functools

import numpy as np
import jax
import jax.numpy as jnp
from jax.experimental import pallas as pl
from jax.experimental.pallas import tpu as pltpu


def _round_up(n, m=128):
    return ((n + m - 1) // m) * m


# ----------------------------------------------------------------------------
# Fused Pallas kernel: h = x; repeat [h = relu?(h @ W_l + b_l)]; store h.
# All weights / biases / activations stay in VMEM for the whole forward.
# ----------------------------------------------------------------------------
def _fused_forward_kernel(*refs, n_layers, relu_flags):
    x_ref = refs[0]
    o_ref = refs[-1]
    h = x_ref[...]
    for l in range(n_layers):
        w = refs[1 + 2 * l][...]
        b = refs[2 + 2 * l][...]                       # (1, N) broadcasts over rows
        h = jnp.dot(h, w, preferred_element_type=jnp.float32) + b
        if relu_flags[l]:
            h = jnp.maximum(h, 0.0)
    o_ref[...] = h.astype(o_ref.dtype)


@functools.partial(jax.jit, static_argnums=(3, 4))
def _fused_forward(x, weights, biases, relu_flags, out_dim):
    """x: (B, C, H, W) f32. weights[l]: (K_l, N_l) f32 with N_l % 128 == 0.
    biases[l]: (1, N_l) f32. Returns logits (B, out_dim) f32."""
    B = x.shape[0]
    xf = x.reshape(B, -1).astype(jnp.float32)   # NCHW flatten == dense-matrix row order
    n_layers = len(weights)
    n_out_pad = weights[-1].shape[1]

    tb = B if B <= 128 else 128                  # batch tile (M rows of every matmul)
    grid = (pl.cdiv(B, tb),)

    in_specs = [pl.BlockSpec((tb, xf.shape[1]), lambda i: (i, 0))]
    flat_args = [xf]
    for w, b in zip(weights, biases):
        in_specs.append(pl.BlockSpec(w.shape, lambda i: (0, 0)))   # whole weight resident
        in_specs.append(pl.BlockSpec(b.shape, lambda i: (0, 0)))
        flat_args += [w, b]

    y = pl.pallas_call(
        functools.partial(_fused_forward_kernel,
                          n_layers=n_layers, relu_flags=relu_flags),
        out_shape=jax.ShapeDtypeStruct((B, n_out_pad), jnp.float32),
        grid=grid,
        in_specs=in_specs,
        out_specs=pl.BlockSpec((tb, n_out_pad), lambda i: (i, 0)),
        compiler_params=pltpu.CompilerParams(dimension_semantics=("parallel",)),
    )(*flat_args)
    return y[:, :out_dim]


def convnet_forward(params, x):
    return _fused_forward(x, params.weights, params.biases,
                          params.relu_flags, params.out_dim)


# ----------------------------------------------------------------------------
# Init-time lowering: conv layer -> dense matrix over NCHW-flattened activations.
# ----------------------------------------------------------------------------
def _conv_to_dense(w, b, in_h, in_w, stride, pad):
    """w: (OC, C, KH, KW), b: (OC,).  Returns M of shape (C*H*W, OC*OH*OW) and the
    per-output-unit bias; column order = NCHW flatten (oc, oy, ox), so it matches
    torch's .view(B, -1) order exactly."""
    w = np.asarray(w, np.float32)
    b = np.asarray(b, np.float32)
    OC, C, KH, KW = w.shape
    OH = (in_h + 2 * pad - KH) // stride + 1
    OW = (in_w + 2 * pad - KW) // stride + 1
    M = np.zeros((C * in_h * in_w, OC * OH * OW), np.float32)
    col_base = np.arange(OC) * (OH * OW)
    row_base = np.arange(C) * (in_h * in_w)
    for oy in range(OH):
        for ox in range(OW):
            cols = col_base + oy * OW + ox
            for i in range(KH):
                y = stride * oy + i - pad
                if y < 0 or y >= in_h:
                    continue
                for j in range(KW):
                    x = stride * ox + j - pad
                    if x < 0 or x >= in_w:
                        continue
                    rows = row_base + y * in_w + x
                    M[rows[:, None], cols[None, :]] = w[:, :, i, j].T
    bias = np.repeat(b, OH * OW)
    return M, bias, OH, OW, OC


# ----------------------------------------------------------------------------
# Parameters: raw PyTorch-layout weights (for the reference) + the pre-lowered,
# pre-padded dense stack consumed by the fused kernel.
# ----------------------------------------------------------------------------
class ConvNetParams:
    def __init__(self, key, in_size=16, in_channel=1,
                 conv_kernels=(4, 4), conv_strides=(2, 2),
                 conv_channels=(16, 32), conv_pads=(1, 1),
                 hidden_dims=(32,), out_dim=10):
        self.in_size = in_size
        self.in_channel = in_channel
        self.conv_kernels = conv_kernels
        self.conv_strides = conv_strides
        self.conv_pads = conv_pads
        self.out_dim = out_dim

        # ---- raw parameters (PyTorch layouts) ----
        self.conv_raw = []
        cur_size, cur_ch = in_size, in_channel
        for k, s, oc, p in zip(conv_kernels, conv_strides, conv_channels, conv_pads):
            key, k1, k2 = jax.random.split(key, 3)
            fan_in = cur_ch * k * k
            w = jax.random.normal(k1, (oc, cur_ch, k, k), jnp.float32) * (1.0 / fan_in) ** 0.5
            b = jax.random.normal(k2, (oc,), jnp.float32) * 0.05
            self.conv_raw.append((w, b))
            cur_size = (cur_size + 2 * p - k) // s + 1
            cur_ch = oc
        cur_neuron = cur_size * cur_size * cur_ch
        self.fc_raw = []
        for in_n, out_n in zip([cur_neuron] + list(hidden_dims[:-1]), hidden_dims):
            key, k1, k2 = jax.random.split(key, 3)
            w = jax.random.normal(k1, (out_n, in_n), jnp.float32) * (1.0 / in_n) ** 0.5
            b = jax.random.normal(k2, (out_n,), jnp.float32) * 0.05
            self.fc_raw.append((w, b))
        key, k1, k2 = jax.random.split(key, 3)
        self.out_w = jax.random.normal(k1, (out_dim, hidden_dims[-1]), jnp.float32) \
            * (1.0 / hidden_dims[-1]) ** 0.5
        self.out_b = jax.random.normal(k2, (out_dim,), jnp.float32) * 0.05

        # ---- init-time preprocessing for the fused kernel ----
        layers = []                      # (dense W (K, N), bias (N,), apply_relu)
        cur_h = cur_w = in_size
        for (w, b), s, p in zip(self.conv_raw, conv_strides, conv_pads):
            M, bias, cur_h, cur_w, _ = _conv_to_dense(w, b, cur_h, cur_w, s, p)
            layers.append((M, bias, True))
        for (w, b) in self.fc_raw:
            layers.append((np.asarray(w, np.float32).T, np.asarray(b, np.float32), True))
        layers.append((np.asarray(self.out_w, np.float32).T,
                       np.asarray(self.out_b, np.float32), False))

        # Chain-pad every output width to a multiple of 128 (lane-dense matmuls and
        # stores); pad the next layer's input rows with zeros to match.
        weights, biases, flags = [], [], []
        prev_width = in_size * in_size * in_channel        # flattened input width
        for M, bias, relu in layers:
            k_real, n_real = M.shape
            assert k_real <= prev_width
            n_pad = _round_up(n_real, 128)
            wp = np.zeros((prev_width, n_pad), np.float32)
            wp[:k_real, :n_real] = M
            bp = np.zeros((1, n_pad), np.float32)
            bp[0, :n_real] = bias
            weights.append(jnp.asarray(wp))
            biases.append(jnp.asarray(bp))
            flags.append(relu)
            prev_width = n_pad
        self.weights = tuple(weights)
        self.biases = tuple(biases)
        self.relu_flags = tuple(flags)


# ----------------------------------------------------------------------------
# Pure-JAX reference (for correctness check)
# ----------------------------------------------------------------------------
def convnet_forward_ref(params, x):
    out = x
    for (w, b), s, p in zip(params.conv_raw, params.conv_strides, params.conv_pads):
        out = jax.lax.conv_general_dilated(
            out, w, window_strides=(s, s), padding=[(p, p), (p, p)],
            dimension_numbers=('NCHW', 'OIHW', 'NCHW'))
        out = jnp.maximum(out + b[None, :, None, None], 0.0)
    B = out.shape[0]
    out = out.reshape(B, -1)
    for (w, b) in params.fc_raw:
        out = jnp.maximum(out @ w.T + b, 0.0)
    return out @ params.out_w.T + params.out_b


if __name__ == "__main__":
    key = jax.random.PRNGKey(0)
    pkey, xkey = jax.random.split(key)
    params = ConvNetParams(pkey)

    B, C, H, W = 2, 1, 16, 16
    x = jax.random.normal(xkey, (B, C, H, W), jnp.float32)

    y = jax.block_until_ready(convnet_forward(params, x))
    y_ref = jax.block_until_ready(convnet_forward_ref(params, x))

    assert y.shape == (B, 10), y.shape
    assert jnp.allclose(y, y_ref, atol=1e-4, rtol=1e-4), (y, y_ref)
    print("KERNEL_OK")
</pallas_src>

<mosaic_0001>
module attributes {stable_mosaic.version = 11 : i64} {
  func.func @_fused_forward_kernel(%arg0: i32, %arg1: memref<2x256xf32, #tpu.memory_space<vmem>>, %arg2: memref<256x1024xf32, #tpu.memory_space<vmem>>, %arg3: memref<1x1024xf32, #tpu.memory_space<vmem>>, %arg4: memref<1024x512xf32, #tpu.memory_space<vmem>>, %arg5: memref<1x512xf32, #tpu.memory_space<vmem>>, %arg6: memref<512x128xf32, #tpu.memory_space<vmem>>, %arg7: memref<1x128xf32, #tpu.memory_space<vmem>>, %arg8: memref<128x128xf32, #tpu.memory_space<vmem>>, %arg9: memref<1x128xf32, #tpu.memory_space<vmem>>, %arg10: memref<2x128xf32, #tpu.memory_space<vmem>>) attributes {dimension_semantics = [#tpu.dimension_semantics<parallel>], iteration_bounds = array<i64: 1>, scalar_prefetch = 0 : i64, scratch_operands = 0 : i64, tpu.core_type = #tpu.core_type<tc>, window_params = [{transform_indices = @transform_0, window_bounds = array<i64: 2, 256>}, {pipeline_mode = #tpu.pipeline_mode<synchronous>, transform_indices = @transform_1, window_bounds = array<i64: 256, 1024>}, {pipeline_mode = #tpu.pipeline_mode<synchronous>, transform_indices = @transform_2, window_bounds = array<i64: 1, 1024>}, {pipeline_mode = #tpu.pipeline_mode<synchronous>, transform_indices = @transform_3, window_bounds = array<i64: 1024, 512>}, {pipeline_mode = #tpu.pipeline_mode<synchronous>, transform_indices = @transform_4, window_bounds = array<i64: 1, 512>}, {pipeline_mode = #tpu.pipeline_mode<synchronous>, transform_indices = @transform_5, window_bounds = array<i64: 512, 128>}, {pipeline_mode = #tpu.pipeline_mode<synchronous>, transform_indices = @transform_6, window_bounds = array<i64: 1, 128>}, {pipeline_mode = #tpu.pipeline_mode<synchronous>, transform_indices = @transform_7, window_bounds = array<i64: 128, 128>}, {pipeline_mode = #tpu.pipeline_mode<synchronous>, transform_indices = @transform_8, window_bounds = array<i64: 1, 128>}, {transform_indices = @transform_9, window_bounds = array<i64: 2, 128>}]} {
    %c0 = arith.constant 0 : index
    %c0_0 = arith.constant 0 : index
    %0 = vector.load %arg1[%c0, %c0_0] : memref<2x256xf32, #tpu.memory_space<vmem>>, vector<2x256xf32>
    %c0_1 = arith.constant 0 : index
    %c0_2 = arith.constant 0 : index
    %1 = vector.load %arg2[%c0_1, %c0_2] : memref<256x1024xf32, #tpu.memory_space<vmem>>, vector<256x1024xf32>
    %c0_3 = arith.constant 0 : index
    %c0_4 = arith.constant 0 : index
    %2 = vector.load %arg3[%c0_3, %c0_4] : memref<1x1024xf32, #tpu.memory_space<vmem>>, vector<1x1024xf32>
    %cst = arith.constant dense<0.000000e+00> : vector<2x1024xf32>
    %3 = tpu.matmul %0, %1, %cst {dimension_numbers = #tpu.dot_dimension_numbers<[1], [0], [0], [1], [0, 0, 1, 1], [], []>} : vector<2x256xf32>, vector<256x1024xf32>, vector<2x1024xf32> -> vector<2x1024xf32>
    %4 = vector.broadcast %2 : vector<1x1024xf32> to vector<2x1024xf32>
    %5 = arith.addf %3, %4 : vector<2x1024xf32>
    %cst_5 = arith.constant 0.000000e+00 : f32
    %6 = vector.broadcast %cst_5 : f32 to vector<2x1024xf32>
    %7 = arith.maximumf %5, %6 : vector<2x1024xf32>
    %c0_6 = arith.constant 0 : index
    %c0_7 = arith.constant 0 : index
    %8 = vector.load %arg4[%c0_6, %c0_7] : memref<1024x512xf32, #tpu.memory_space<vmem>>, vector<1024x512xf32>
    %c0_8 = arith.constant 0 : index
    %c0_9 = arith.constant 0 : index
    %9 = vector.load %arg5[%c0_8, %c0_9] : memref<1x512xf32, #tpu.memory_space<vmem>>, vector<1x512xf32>
    %cst_10 = arith.constant dense<0.000000e+00> : vector<2x512xf32>
    %10 = tpu.matmul %7, %8, %cst_10 {dimension_numbers = #tpu.dot_dimension_numbers<[1], [0], [0], [1], [0, 0, 1, 1], [], []>} : vector<2x1024xf32>, vector<1024x512xf32>, vector<2x512xf32> -> vector<2x512xf32>
    %11 = vector.broadcast %9 : vector<1x512xf32> to vector<2x512xf32>
    %12 = arith.addf %10, %11 : vector<2x512xf32>
    %cst_11 = arith.constant 0.000000e+00 : f32
    %13 = vector.broadcast %cst_11 : f32 to vector<2x512xf32>
    %14 = arith.maximumf %12, %13 : vector<2x512xf32>
    %c0_12 = arith.constant 0 : index
    %c0_13 = arith.constant 0 : index
    %15 = vector.load %arg6[%c0_12, %c0_13] : memref<512x128xf32, #tpu.memory_space<vmem>>, vector<512x128xf32>
    %c0_14 = arith.constant 0 : index
    %c0_15 = arith.constant 0 : index
    %16 = vector.load %arg7[%c0_14, %c0_15] : memref<1x128xf32, #tpu.memory_space<vmem>>, vector<1x128xf32>
    %cst_16 = arith.constant dense<0.000000e+00> : vector<2x128xf32>
    %17 = tpu.matmul %14, %15, %cst_16 {dimension_numbers = #tpu.dot_dimension_numbers<[1], [0], [0], [1], [0, 0, 1, 1], [], []>} : vector<2x512xf32>, vector<512x128xf32>, vector<2x128xf32> -> vector<2x128xf32>
    %18 = vector.broadcast %16 : vector<1x128xf32> to vector<2x128xf32>
    %19 = arith.addf %17, %18 : vector<2x128xf32>
    %cst_17 = arith.constant 0.000000e+00 : f32
    %20 = vector.broadcast %cst_17 : f32 to vector<2x128xf32>
    %21 = arith.maximumf %19, %20 : vector<2x128xf32>
    %c0_18 = arith.constant 0 : index
    %c0_19 = arith.constant 0 : index
    %22 = vector.load %arg8[%c0_18, %c0_19] : memref<128x128xf32, #tpu.memory_space<vmem>>, vector<128x128xf32>
    %c0_20 = arith.constant 0 : index
    %c0_21 = arith.constant 0 : index
    %23 = vector.load %arg9[%c0_20, %c0_21] : memref<1x128xf32, #tpu.memory_space<vmem>>, vector<1x128xf32>
    %cst_22 = arith.constant dense<0.000000e+00> : vector<2x128xf32>
    %24 = tpu.matmul %21, %22, %cst_22 {dimension_numbers = #tpu.dot_dimension_numbers<[1], [0], [0], [1], [0, 0, 1, 1], [], []>} : vector<2x128xf32>, vector<128x128xf32>, vector<2x128xf32> -> vector<2x128xf32>
    %25 = vector.broadcast %23 : vector<1x128xf32> to vector<2x128xf32>
    %26 = arith.addf %24, %25 : vector<2x128xf32>
    %c0_23 = arith.constant 0 : index
    %c0_24 = arith.constant 0 : index
    %27 = vector.load %arg10[%c0_23, %c0_24] : memref<2x128xf32, #tpu.memory_space<vmem>>, vector<2x128xf32>
    tpu.vector_store %arg10[%c0_23, %c0_24], %26 {strides = array<i32>} : memref<2x128xf32, #tpu.memory_space<vmem>>, vector<2x128xf32>,
    return
  }
  func.func @transform_0(%arg0: i32) -> (i32, i32) {
    %c0_i32 = arith.constant 0 : i32
    %c0_i32_0 = arith.constant 0 : i32
    return %arg0, %c0_i32 : i32, i32
  }
  func.func @transform_1(%arg0: i32) -> (i32, i32) {
    %c0_i32 = arith.constant 0 : i32
    %c0_i32_0 = arith.constant 0 : i32
    %c0_i32_1 = arith.constant 0 : i32
    return %c0_i32, %c0_i32_0 : i32, i32
  }
  func.func @transform_2(%arg0: i32) -> (i32, i32) {
    %c0_i32 = arith.constant 0 : i32
    %c0_i32_0 = arith.constant 0 : i32
    %c0_i32_1 = arith.constant 0 : i32
    return %c0_i32, %c0_i32_0 : i32, i32
  }
  func.func @transform_3(%arg0: i32) -> (i32, i32) {
    %c0_i32 = arith.constant 0 : i32
    %c0_i32_0 = arith.constant 0 : i32
    %c0_i32_1 = arith.constant 0 : i32
    return %c0_i32, %c0_i32_0 : i32, i32
  }
  func.func @transform_4(%arg0: i32) -> (i32, i32) {
    %c0_i32 = arith.constant 0 : i32
    %c0_i32_0 = arith.constant 0 : i32
    %c0_i32_1 = arith.constant 0 : i32
    return %c0_i32, %c0_i32_0 : i32, i32
  }
  func.func @transform_5(%arg0: i32) -> (i32, i32) {
    %c0_i32 = arith.constant 0 : i32
    %c0_i32_0 = arith.constant 0 : i32
    %c0_i32_1 = arith.constant 0 : i32
    return %c0_i32, %c0_i32_0 : i32, i32
  }
  func.func @transform_6(%arg0: i32) -> (i32, i32) {
    %c0_i32 = arith.constant 0 : i32
    %c0_i32_0 = arith.constant 0 : i32
    %c0_i32_1 = arith.constant 0 : i32
    return %c0_i32, %c0_i32_0 : i32, i32
  }
  func.func @transform_7(%arg0: i32) -> (i32, i32) {
    %c0_i32 = arith.constant 0 : i32
    %c0_i32_0 = arith.constant 0 : i32
    %c0_i32_1 = arith.constant 0 : i32
    return %c0_i32, %c0_i32_0 : i32, i32
  }
  func.func @transform_8(%arg0: i32) -> (i32, i32) {
    %c0_i32 = arith.constant 0 : i32
    %c0_i32_0 = arith.constant 0 : i32
    %c0_i32_1 = arith.constant 0 : i32
    return %c0_i32, %c0_i32_0 : i32, i32
  }
  func.func @transform_9(%arg0: i32) -> (i32, i32) {
    %c0_i32 = arith.constant 0 : i32
    %c0_i32_0 = arith.constant 0 : i32
    return %arg0, %c0_i32 : i32, i32
  }
}

</mosaic_0001>

<llo_original>
// kernel: _fused_forward.1
$region0: #{_fused_forward.1}
  #allocation0 [shape = 'u32[]', space=smem, size = 0x4, offset = 0x4, fixed_abs, tag = 'smem constant byte address 0x4 - core index']
  #allocation1 [shape = 'u32[72,128]{1,0:T(1,128)}', space=vmem, size = 0x9000, scoped, tag = 'internal scratch']
  %s0 = inlined_call_operand.vmem [shape: f32[2,256], index: 0, kind: input, shape index: {}]
  %s1 = inlined_call_operand.hbm [shape: f32[256,1024], index: 1, kind: input, shape index: {}]
  %s2 = inlined_call_operand.hbm [shape: f32[1,1024], index: 2, kind: input, shape index: {}]
  %s3 = inlined_call_operand.hbm [shape: f32[1024,512], index: 3, kind: input, shape index: {}]
  %s4 = inlined_call_operand.hbm [shape: f32[1,512], index: 4, kind: input, shape index: {}]
  %s5 = inlined_call_operand.hbm [shape: f32[512,128], index: 5, kind: input, shape index: {}]
  %s6 = inlined_call_operand.hbm [shape: f32[1,128], index: 6, kind: input, shape index: {}]
  %s7 = inlined_call_operand.hbm [shape: f32[128,128], index: 7, kind: input, shape index: {}]
  %s8 = inlined_call_operand.hbm [shape: f32[1,128], index: 8, kind: input, shape index: {}]
  %s9 = inlined_call_operand.hbm [shape: f32[2,128], index: 9, kind: output, shape index: {}]
  %s10 = sld [smem:[#allocation0]]
  $region78: #{_fused_forward.1} parent=0
    _
  %s12 = ssub.s32 1, %s10
  %s13 = scalar_select 0, %s12, %s10
  $region1: #{_fused_forward.1} parent=0
    #allocation2 [shape = 'u8[1048576]{0}', space=vmem, size = 0x100000, scoped, tag = 'input window, operand 1, single buffered']
    #allocation3 [shape = 's32[1]{0}', space=sflag, size = 0x4, scoped, tag = 'scoped memory for _fused_forward.1']
    #allocation4 [shape = 's32[1]{0}', space=sflag, size = 0x4, scoped, tag = 'scoped memory for _fused_forward.1']
    #allocation5 [shape = 'u8[4096]{0}', space=vmem, size = 0x1000, scoped, tag = 'input window, operand 2, single buffered']
    #allocation6 [shape = 's32[1]{0}', space=sflag, size = 0x4, scoped, tag = 'scoped memory for _fused_forward.1']
    #allocation7 [shape = 'u8[2097152]{0}', space=vmem, size = 0x200000, scoped, tag = 'input window, operand 3, single buffered']
    #allocation8 [shape = 'u8[2048]{0}', space=vmem, size = 0x800, scoped, tag = 'input window, operand 4, single buffered']
    #allocation9 [shape = 's32[1]{0}', space=sflag, size = 0x4, scoped, tag = 'scoped memory for _fused_forward.1']
    #allocation10 [shape = 'u8[262144]{0}', space=vmem, size = 0x40000, scoped, tag = 'input window, operand 5, single buffered']
    #allocation11 [shape = 'u8[512]{0}', space=vmem, size = 0x400, scoped, tag = 'input window, operand 6, single buffered']
    #allocation12 [shape = 's32[1]{0}', space=sflag, size = 0x4, scoped, tag = 'scoped memory for _fused_forward.1']
    #allocation13 [shape = 'u8[65536]{0}', space=vmem, size = 0x10000, scoped, tag = 'input window, operand 7, single buffered']
    #allocation14 [shape = 'u8[512]{0}', space=vmem, size = 0x400, scoped, tag = 'input window, operand 8, single buffered']
    #allocation15 [shape = 's32[1]{0}', space=sflag, size = 0x4, scoped, tag = 'scoped memory for _fused_forward.1']
    #allocation16 [shape = 'u8[1024]{0}', space=vmem, size = 0x400, scoped, tag = 'output window, operand 0, single buffered']
    %14 = vsyncpa [#allocation3], 0
    %15 = vsyncpa [#allocation6], 0
    %16 = vsyncpa [#allocation9], 0
    %17 = vsyncpa [#allocation12], 0
    %18 = vsyncpa [#allocation15], 0
    %19 = vsyncpa [#allocation4], 0
    // Predicated region
    $region2: #{_fused_forward.1} parent=1 // pred_check
      _
    $region3: #{_fused_forward.1} parent=1 // pred_check_branch
      %21 = sbr.rel (0) target = $region5
    $region4: #{_fused_forward.1} parent=1 // pred_region
      _
    $region5: #{_fused_forward.1} parent=1 // pred_fallthru
      _
    // Predicated region
    $region6: #{_fused_forward.1} parent=1 // pred_check
      _
    $region7: #{_fused_forward.1} parent=1 // pred_check_branch
      %23 = sbr.rel (0) target = $region9
    $region8: #{_fused_forward.1} parent=1 // pred_region
      %25 = vsyncadd [#allocation3], 0
      %s26 = sshll.u32 %s1, 4
      %s27 = int_to_ptr.hbm [resolvable:$true] %s26
      %s28 = sshll.u32 [#allocation2], 4
      %s29 = int_to_ptr.vmem [resolvable:$true] %s28
      %34 = dma.hbm_to_vmem [thread:$0]  %s27, 32768, %s29, [#allocation3], 1024, 1024, 64
    $region9: #{_fused_forward.1} parent=1 // pred_fallthru
      _
    // Predicated region
    $region10: #{_fused_forward.1} parent=1 // pred_check
      _
    $region11: #{_fused_forward.1} parent=1 // pred_check_branch
      %36 = sbr.rel (0) target = $region13
    $region12: #{_fused_forward.1} parent=1 // pred_region
      %38 = vsyncadd [#allocation6], 0
      %s40 = sshll.u32 %s2, 4
      %s41 = int_to_ptr.hbm [resolvable:$true] %s40
      %s42 = sshll.u32 [#allocation5], 4
      %s43 = int_to_ptr.vmem [resolvable:$true] %s42
      %45 = dma.hbm_to_vmem [thread:$0]  %s41, 128, %s43, [#allocation6]
    $region13: #{_fused_forward.1} parent=1 // pred_fallthru
      _
    // Predicated region
    $region14: #{_fused_forward.1} parent=1 // pred_check
      _
    $region15: #{_fused_forward.1} parent=1 // pred_check_branch
      %47 = sbr.rel (0) target = $region17
    $region16: #{_fused_forward.1} parent=1 // pred_region
      %49 = vsyncadd [#allocation6], 0
      %s50 = sshll.u32 %s3, 4
      %s51 = int_to_ptr.hbm [resolvable:$true] %s50
      %s52 = sshll.u32 [#allocation7], 4
      %s53 = int_to_ptr.vmem [resolvable:$true] %s52
      %58 = dma.hbm_to_vmem [thread:$0]  %s51, 65536, %s53, [#allocation6], 512, 512, 32
    $region17: #{_fused_forward.1} parent=1 // pred_fallthru
      _
    // Predicated region
    $region18: #{_fused_forward.1} parent=1 // pred_check
      _
    $region19: #{_fused_forward.1} parent=1 // pred_check_branch
      %60 = sbr.rel (0) target = $region21
    $region20: #{_fused_forward.1} parent=1 // pred_region
      %62 = vsyncadd [#allocation9], 0
      %s64 = sshll.u32 %s4, 4
      %s65 = int_to_ptr.hbm [resolvable:$true] %s64
      %s66 = sshll.u32 [#allocation8], 4
      %s67 = int_to_ptr.vmem [resolvable:$true] %s66
      %69 = dma.hbm_to_vmem [thread:$0]  %s65, 64, %s67, [#allocation9]
    $region21: #{_fused_forward.1} parent=1 // pred_fallthru
      _
    // Predicated region
    $region22: #{_fused_forward.1} parent=1 // pred_check
      _
    $region23: #{_fused_forward.1} parent=1 // pred_check_branch
      %71 = sbr.rel (0) target = $region25
    $region24: #{_fused_forward.1} parent=1 // pred_region
      %73 = vsyncadd [#allocation9], 0
      %s74 = sshll.u32 %s5, 4
      %s75 = int_to_ptr.hbm [resolvable:$true] %s74
      %s76 = sshll.u32 [#allocation10], 4
      %s77 = int_to_ptr.vmem [resolvable:$true] %s76
      %82 = dma.hbm_to_vmem [thread:$0]  %s75, 8192, %s77, [#allocation9], 128, 128, 8
    $region25: #{_fused_forward.1} parent=1 // pred_fallthru
      _
    // Predicated region
    $region26: #{_fused_forward.1} parent=1 // pred_check
      _
    $region27: #{_fused_forward.1} parent=1 // pred_check_branch
      %84 = sbr.rel (0) target = $region29
    $region28: #{_fused_forward.1} parent=1 // pred_region
      %86 = vsyncadd [#allocation12], 0
      %s88 = sshll.u32 %s6, 4
      %s89 = int_to_ptr.hbm [resolvable:$true] %s88
      %s90 = sshll.u32 [#allocation11], 4
      %s91 = int_to_ptr.vmem [resolvable:$true] %s90
      %93 = dma.hbm_to_vmem [thread:$0]  %s89, 16, %s91, [#allocation12]
    $region29: #{_fused_forward.1} parent=1 // pred_fallthru
      _
    // Predicated region
    $region30: #{_fused_forward.1} parent=1 // pred_check
      _
    $region31: #{_fused_forward.1} parent=1 // pred_check_branch
      %95 = sbr.rel (0) target = $region33
    $region32: #{_fused_forward.1} parent=1 // pred_region
      %97 = vsyncadd [#allocation12], 0
      %s98 = sshll.u32 %s7, 4
      %s99 = int_to_ptr.hbm [resolvable:$true] %s98
      %s100 = sshll.u32 [#allocation13], 4
      %s101 = int_to_ptr.vmem [resolvable:$true] %s100
      %106 = dma.hbm_to_vmem [thread:$0]  %s99, 2048, %s101, [#allocation12], 128, 128, 8
    $region33: #{_fused_forward.1} parent=1 // pred_fallthru
      _
    // Predicated region
    $region34: #{_fused_forward.1} parent=1 // pred_check
      _
    $region35: #{_fused_forward.1} parent=1 // pred_check_branch
      %108 = sbr.rel (0) target = $region37
    $region36: #{_fused_forward.1} parent=1 // pred_region
      %110 = vsyncadd [#allocation15], 0
      %s112 = sshll.u32 %s8, 4
      %s113 = int_to_ptr.hbm [resolvable:$true] %s112
      %s114 = sshll.u32 [#allocation14], 4
      %s115 = int_to_ptr.vmem [resolvable:$true] %s114
      %117 = dma.hbm_to_vmem [thread:$0]  %s113, 16, %s115, [#allocation15]
    $region37: #{_fused_forward.1} parent=1 // pred_fallthru
      _
    // Predicated region
    $region38: #{_fused_forward.1} parent=1 // pred_check
      _
    $region39: #{_fused_forward.1} parent=1 // pred_check_branch
      %119 = sbr.rel (0) target = $region41
    $region40: #{_fused_forward.1} parent=1 // pred_region
      %121 = dma.done [#allocation3], 32768
    $region41: #{_fused_forward.1} parent=1 // pred_fallthru
      _
    // Predicated region
    $region42: #{_fused_forward.1} parent=1 // pred_check
      _
    $region43: #{_fused_forward.1} parent=1 // pred_check_branch
      %123 = sbr.rel (0) target = $region45
    $region44: #{_fused_forward.1} parent=1 // pred_region
      %125 = dma.done [#allocation6], 128
    $region45: #{_fused_forward.1} parent=1 // pred_fallthru
      _
    // Predicated region
    $region46: #{_fused_forward.1} parent=1 // pred_check
      _
    $region47: #{_fused_forward.1} parent=1 // pred_check_branch
      %127 = sbr.rel (0) target = $region49
    $region48: #{_fused_forward.1} parent=1 // pred_region
      %129 = dma.done [#allocation6], 65536
    $region49: #{_fused_forward.1} parent=1 // pred_fallthru
      _
    // Predicated region
    $region50: #{_fused_forward.1} parent=1 // pred_check
      _
    $region51: #{_fused_forward.1} parent=1 // pred_check_branch
      %131 = sbr.rel (0) target = $region53
    $region52: #{_fused_forward.1} parent=1 // pred_region
      %133 = dma.done [#allocation9], 64
    $region53: #{_fused_forward.1} parent=1 // pred_fallthru
      _
    // Predicated region
    $region54: #{_fused_forward.1} parent=1 // pred_check
      _
    $region55: #{_fused_forward.1} parent=1 // pred_check_branch
      %135 = sbr.rel (0) target = $region57
    $region56: #{_fused_forward.1} parent=1 // pred_region
      %137 = dma.done [#allocation9], 8192
    $region57: #{_fused_forward.1} parent=1 // pred_fallthru
      _
    // Predicated region
    $region58: #{_fused_forward.1} parent=1 // pred_check
      _
    $region59: #{_fused_forward.1} parent=1 // pred_check_branch
      %139 = sbr.rel (0) target = $region61
    $region60: #{_fused_forward.1} parent=1 // pred_region
      %141 = dma.done [#allocation12], 16
    $region61: #{_fused_forward.1} parent=1 // pred_fallthru
      _
    // Predicated region
    $region62: #{_fused_forward.1} parent=1 // pred_check
      _
    $region63: #{_fused_forward.1} parent=1 // pred_check_branch
      %143 = sbr.rel (0) target = $region65
    $region64: #{_fused_forward.1} parent=1 // pred_region
      %145 = dma.done [#allocation12], 2048
    $region65: #{_fused_forward.1} parent=1 // pred_fallthru
      _
    // Predicated region
    $region66: #{_fused_forward.1} parent=1 // pred_check
      _
    $region67: #{_fused_forward.1} parent=1 // pred_check_branch
      %147 = sbr.rel (0) target = $region69
    $region68: #{_fused_forward.1} parent=1 // pred_region
      %149 = dma.done [#allocation15], 16
    $region69: #{_fused_forward.1} parent=1 // pred_fallthru
      _
    %v150 = vld [vmem:[%s0] sm:$0xf]
    %v151 = vld [vmem:[#allocation2] sm:$0xff]
    %v152 = vld [vmem:[#allocation2 + $0x8] sm:$0xff]
    %v153 = vld [vmem:[#allocation2 + $0x10] sm:$0xff]
    %v154 = vld [vmem:[#allocation2 + $0x18] sm:$0xff]
    %v155 = vld [vmem:[#allocation2 + $0x20] sm:$0xff]
    %v156 = vld [vmem:[#allocation2 + $0x28] sm:$0xff]
    %v157 = vld [vmem:[#allocation2 + $0x30] sm:$0xff]
    %v158 = vld [vmem:[#allocation2 + $0x38] sm:$0xff]
    %v159 = vld [vmem:[#allocation2 + $0x40] sm:$0xff]
    %v160 = vld [vmem:[#allocation2 + $0x48] sm:$0xff]
    %v161 = vld [vmem:[#allocation2 + $0x50] sm:$0xff]
    %v162 = vld [vmem:[#allocation2 + $0x58] sm:$0xff]
    %v163 = vld [vmem:[#allocation2 + $0x60] sm:$0xff]
    %v164 = vld [vmem:[#allocation2 + $0x68] sm:$0xff]
    %v165 = vld [vmem:[#allocation2 + $0x70] sm:$0xff]
    %v166 = vld [vmem:[#allocation2 + $0x78] sm:$0xff]
    %v167 = vld [vmem:[#allocation2 + $0x80] sm:$0xff]
    %v168 = vld [vmem:[#allocation2 + $0x88] sm:$0xff]
    %v169 = vld [vmem:[#allocation2 + $0x90] sm:$0xff]
    %v170 = vld [vmem:[#allocation2 + $0x98] sm:$0xff]
    %v171 = vld [vmem:[#allocation2 + $0xa0] sm:$0xff]
    %v172 = vld [vmem:[#allocation2 + $0xa8] sm:$0xff]
    %v173 = vld [vmem:[#allocation2 + $0xb0] sm:$0xff]
    %v174 = vld [vmem:[#allocation2 + $0xb8] sm:$0xff]
    %v175 = vld [vmem:[#allocation2 + $0xc0] sm:$0xff]
    %v176 = vld [vmem:[#allocation2 + $0xc8] sm:$0xff]
    %v177 = vld [vmem:[#allocation2 + $0xd0] sm:$0xff]
    %v178 = vld [vmem:[#allocation2 + $0xd8] sm:$0xff]
    %v179 = vld [vmem:[#allocation2 + $0xe0] sm:$0xff]
    %v180 = vld [vmem:[#allocation2 + $0xe8] sm:$0xff]
    %v181 = vld [vmem:[#allocation2 + $0xf0] sm:$0xff]
    %v182 = vld [vmem:[#allocation2 + $0xf8] sm:$0xff]
    %v183 = vld [vmem:[#allocation2 + $0x100] sm:$0xff]
    %v184 = vld [vmem:[#allocation2 + $0x108] sm:$0xff]
    %v185 = vld [vmem:[#allocation2 + $0x110] sm:$0xff]
    %v186 = vld [vmem:[#allocation2 + $0x118] sm:$0xff]
    %v187 = vld [vmem:[#allocation2 + $0x120] sm:$0xff]
    %v188 = vld [vmem:[#allocation2 + $0x128] sm:$0xff]
    %v189 = vld [vmem:[#allocation2 + $0x130] sm:$0xff]
    %v190 = vld [vmem:[#allocation2 + $0x138] sm:$0xff]
    %v191 = vld [vmem:[#allocation2 + $0x140] sm:$0xff]
    %v192 = vld [vmem:[#allocation2 + $0x148] sm:$0xff]
    %v193 = vld [vmem:[#allocation2 + $0x150] sm:$0xff]
    %v194 = vld [vmem:[#allocation2 + $0x158] sm:$0xff]
    %v195 = vld [vmem:[#allocation2 + $0x160] sm:$0xff]
    %v196 = vld [vmem:[#allocation2 + $0x168] sm:$0xff]
    %v197 = vld [vmem:[#allocation2 + $0x170] sm:$0xff]
    %v198 = vld [vmem:[#allocation2 + $0x178] sm:$0xff]
    %v199 = vld [vmem:[#allocation2 + $0x180] sm:$0xff]
    %v200 = vld [vmem:[#allocation2 + $0x188] sm:$0xff]
    %v201 = vld [vmem:[#allocation2 + $0x190] sm:$0xff]
    %v202 = vld [vmem:[#allocation2 + $0x198] sm:$0xff]
    %v203 = vld [vmem:[#allocation2 + $0x1a0] sm:$0xff]
    %v204 = vld [vmem:[#allocation2 + $0x1a8] sm:$0xff]
    %v205 = vld [vmem:[#allocation2 + $0x1b0] sm:$0xff]
    %v206 = vld [vmem:[#allocation2 + $0x1b8] sm:$0xff]
    %v207 = vld [vmem:[#allocation2 + $0x1c0] sm:$0xff]
    %v208 = vld [vmem:[#allocation2 + $0x1c8] sm:$0xff]
    %v209 = vld [vmem:[#allocation2 + $0x1d0] sm:$0xff]
    %v210 = vld [vmem:[#allocation2 + $0x1d8] sm:$0xff]
    %v211 = vld [vmem:[#allocation2 + $0x1e0] sm:$0xff]
    %v212 = vld [vmem:[#allocation2 + $0x1e8] sm:$0xff]
    %v213 = vld [vmem:[#allocation2 + $0x1f0] sm:$0xff]
    %v214 = vld [vmem:[#allocation2 + $0x1f8] sm:$0xff]
    %v215 = vld [vmem:[#allocation2 + $0x200] sm:$0xff]
    %v216 = vld [vmem:[#allocation2 + $0x208] sm:$0xff]
    %v217 = vld [vmem:[#allocation2 + $0x210] sm:$0xff]
    %v218 = vld [vmem:[#allocation2 + $0x218] sm:$0xff]
    %v219 = vld [vmem:[#allocation2 + $0x220] sm:$0xff]
    %v220 = vld [vmem:[#allocation2 + $0x228] sm:$0xff]
    %v221 = vld [vmem:[#allocation2 + $0x230] sm:$0xff]
    %v222 = vld [vmem:[#allocation2 + $0x238] sm:$0xff]
    %v223 = vld [vmem:[#allocation2 + $0x240] sm:$0xff]
    %v224 = vld [vmem:[#allocation2 + $0x248] sm:$0xff]
    %v225 = vld [vmem:[#allocation2 + $0x250] sm:$0xff]
    %v226 = vld [vmem:[#allocation2 + $0x258] sm:$0xff]
    %v227 = vld [vmem:[#allocation2 + $0x260] sm:$0xff]
    %v228 = vld [vmem:[#allocation2 + $0x268] sm:$0xff]
    %v229 = vld [vmem:[#allocation2 + $0x270] sm:$0xff]
    %v230 = vld [vmem:[#allocation2 + $0x278] sm:$0xff]
    %v231 = vld [vmem:[#allocation2 + $0x280] sm:$0xff]
    %v232 = vld [vmem:[#allocation2 + $0x288] sm:$0xff]
    %v233 = vld [vmem:[#allocation2 + $0x290] sm:$0xff]
    %v234 = vld [vmem:[#allocation2 + $0x298] sm:$0xff]
    %v235 = vld [vmem:[#allocation2 + $0x2a0] sm:$0xff]
    %v236 = vld [vmem:[#allocation2 + $0x2a8] sm:$0xff]
    %v237 = vld [vmem:[#allocation2 + $0x2b0] sm:$0xff]
    %v238 = vld [vmem:[#allocation2 + $0x2b8] sm:$0xff]
    %v239 = vld [vmem:[#allocation2 + $0x2c0] sm:$0xff]
    %v240 = vld [vmem:[#allocation2 + $0x2c8] sm:$0xff]
    %v241 = vld [vmem:[#allocation2 + $0x2d0] sm:$0xff]
    %v242 = vld [vmem:[#allocation2 + $0x2d8] sm:$0xff]
    %v243 = vld [vmem:[#allocation2 + $0x2e0] sm:$0xff]
    %v244 = vld [vmem:[#allocation2 + $0x2e8] sm:$0xff]
    %v245 = vld [vmem:[#allocation2 + $0x2f0] sm:$0xff]
    %v246 = vld [vmem:[#allocation2 + $0x2f8] sm:$0xff]
    %v247 = vld [vmem:[#allocation2 + $0x300] sm:$0xff]
    %v248 = vld [vmem:[#allocation2 + $0x308] sm:$0xff]
    %v249 = vld [vmem:[#allocation2 + $0x310] sm:$0xff]
    %v250 = vld [vmem:[#allocation2 + $0x318] sm:$0xff]
    %v251 = vld [vmem:[#allocation2 + $0x320] sm:$0xff]
    %v252 = vld [vmem:[#allocation2 + $0x328] sm:$0xff]
    %v253 = vld [vmem:[#allocation2 + $0x330] sm:$0xff]
    %v254 = vld [vmem:[#allocation2 + $0x338] sm:$0xff]
    %v255 = vld [vmem:[#allocation2 + $0x340] sm:$0xff]
    %v256 = vld [vmem:[#allocation2 + $0x348] sm:$0xff]
    %v257 = vld [vmem:[#allocation2 + $0x350] sm:$0xff]
    %v258 = vld [vmem:[#allocation2 + $0x358] sm:$0xff]
    %v259 = vld [vmem:[#allocation2 + $0x360] sm:$0xff]
    %v260 = vld [vmem:[#allocation2 + $0x368] sm:$0xff]
    %v261 = vld [vmem:[#allocation2 + $0x370] sm:$0xff]
    %v262 = vld [vmem:[#allocation2 + $0x378] sm:$0xff]
    %v263 = vld [vmem:[#allocation2 + $0x380] sm:$0xff]
    %v264 = vld [vmem:[#allocation2 + $0x388] sm:$0xff]
    %v265 = vld [vmem:[#allocation2 + $0x390] sm:$0xff]
    %v266 = vld [vmem:[#allocation2 + $0x398] sm:$0xff]
    %v267 = vld [vmem:[#allocation2 + $0x3a0] sm:$0xff]
    %v268 = vld [vmem:[#allocation2 + $0x3a8] sm:$0xff]
    %v269 = vld [vmem:[#allocation2 + $0x3b0] sm:$0xff]
    %v270 = vld [vmem:[#allocation2 + $0x3b8] sm:$0xff]
    %v271 = vld [vmem:[#allocation2 + $0x3c0] sm:$0xff]
    %v272 = vld [vmem:[#allocation2 + $0x3c8] sm:$0xff]
    %v273 = vld [vmem:[#allocation2 + $0x3d0] sm:$0xff]
    %v274 = vld [vmem:[#allocation2 + $0x3d8] sm:$0xff]
    %v275 = vld [vmem:[#allocation2 + $0x3e0] sm:$0xff]
    %v276 = vld [vmem:[#allocation2 + $0x3e8] sm:$0xff]
    %v277 = vld [vmem:[#allocation2 + $0x3f0] sm:$0xff]
    %v278 = vld [vmem:[#allocation2 + $0x3f8] sm:$0xff]
    %v279 = vld [vmem:[#allocation2 + $0x400] sm:$0xff]
    %v280 = vld [vmem:[#allocation2 + $0x408] sm:$0xff]
    %v281 = vld [vmem:[#allocation2 + $0x410] sm:$0xff]
    %v282 = vld [vmem:[#allocation2 + $0x418] sm:$0xff]
    %v283 = vld [vmem:[#allocation2 + $0x420] sm:$0xff]
    %v284 = vld [vmem:[#allocation2 + $0x428] sm:$0xff]
    %v285 = vld [vmem:[#allocation2 + $0x430] sm:$0xff]
    %v286 = vld [vmem:[#allocation2 + $0x438] sm:$0xff]
    %v287 = vld [vmem:[#allocation2 + $0x440] sm:$0xff]
    %v288 = vld [vmem:[#allocation2 + $0x448] sm:$0xff]
    %v289 = vld [vmem:[#allocation2 + $0x450] sm:$0xff]
    %v290 = vld [vmem:[#allocation2 + $0x458] sm:$0xff]
    %v291 = vld [vmem:[#allocation2 + $0x460] sm:$0xff]
    %v292 = vld [vmem:[#allocation2 + $0x468] sm:$0xff]
    %v293 = vld [vmem:[#allocation2 + $0x470] sm:$0xff]
    %v294 = vld [vmem:[#allocation2 + $0x478] sm:$0xff]
    %v295 = vld [vmem:[#allocation2 + $0x480] sm:$0xff]
    %v296 = vld [vmem:[#allocation2 + $0x488] sm:$0xff]
    %v297 = vld [vmem:[#allocation2 + $0x490] sm:$0xff]
    %v298 = vld [vmem:[#allocation2 + $0x498] sm:$0xff]
    %v299 = vld [vmem:[#allocation2 + $0x4a0] sm:$0xff]
    %v300 = vld [vmem:[#allocation2 + $0x4a8] sm:$0xff]
    %v301 = vld [vmem:[#allocation2 + $0x4b0] sm:$0xff]
    %v302 = vld [vmem:[#allocation2 + $0x4b8] sm:$0xff]
    %v303 = vld [vmem:[#allocation2 + $0x4c0] sm:$0xff]
    %v304 = vld [vmem:[#allocation2 + $0x4c8] sm:$0xff]
    %v305 = vld [vmem:[#allocation2 + $0x4d0] sm:$0xff]
    %v306 = vld [vmem:[#allocation2 + $0x4d8] sm:$0xff]
    %v307 = vld [vmem:[#allocation2 + $0x4e0] sm:$0xff]
    %v308 = vld [vmem:[#allocation2 + $0x4e8] sm:$0xff]
    %v309 = vld [vmem:[#allocation2 + $0x4f0] sm:$0xff]
    %v310 = vld [vmem:[#allocation2 + $0x4f8] sm:$0xff]
    %v311 = vld [vmem:[#allocation2 + $0x500] sm:$0xff]
    %v312 = vld [vmem:[#allocation2 + $0x508] sm:$0xff]
    %v313 = vld [vmem:[#allocation2 + $0x510] sm:$0xff]
    %v314 = vld [vmem:[#allocation2 + $0x518] sm:$0xff]
    %v315 = vld [vmem:[#allocation2 + $0x520] sm:$0xff]
    %v316 = vld [vmem:[#allocation2 + $0x528] sm:$0xff]
    %v317 = vld [vmem:[#allocation2 + $0x530] sm:$0xff]
    %v318 = vld [vmem:[#allocation2 + $0x538] sm:$0xff]
    %v319 = vld [vmem:[#allocation2 + $0x540] sm:$0xff]
    %v320 = vld [vmem:[#allocation2 + $0x548] sm:$0xff]
    %v321 = vld [vmem:[#allocation2 + $0x550] sm:$0xff]
    %v322 = vld [vmem:[#allocation2 + $0x558] sm:$0xff]
    %v323 = vld [vmem:[#allocation2 + $0x560] sm:$0xff]
    %v324 = vld [vmem:[#allocation2 + $0x568] sm:$0xff]
    %v325 = vld [vmem:[#allocation2 + $0x570] sm:$0xff]
    %v326 = vld [vmem:[#allocation2 + $0x578] sm:$0xff]
    %v327 = vld [vmem:[#allocation2 + $0x580] sm:$0xff]
    %v328 = vld [vmem:[#allocation2 + $0x588] sm:$0xff]
    %v329 = vld [vmem:[#allocation2 + $0x590] sm:$0xff]
    %v330 = vld [vmem:[#allocation2 + $0x598] sm:$0xff]
    %v331 = vld [vmem:[#allocation2 + $0x5a0] sm:$0xff]
    %v332 = vld [vmem:[#allocation2 + $0x5a8] sm:$0xff]
    %v333 = vld [vmem:[#allocation2 + $0x5b0] sm:$0xff]
    %v334 = vld [vmem:[#allocation2 + $0x5b8] sm:$0xff]
    %v335 = vld [vmem:[#allocation2 + $0x5c0] sm:$0xff]
    %v336 = vld [vmem:[#allocation2 + $0x5c8] sm:$0xff]
    %v337 = vld [vmem:[#allocation2 + $0x5d0] sm:$0xff]
    %v338 = vld [vmem:[#allocation2 + $0x5d8] sm:$0xff]
    %v339 = vld [vmem:[#allocation2 + $0x5e0] sm:$0xff]
    %v340 = vld [vmem:[#allocation2 + $0x5e8] sm:$0xff]
    %v341 = vld [vmem:[#allocation2 + $0x5f0] sm:$0xff]
    %v342 = vld [vmem:[#allocation2 + $0x5f8] sm:$0xff]
    %v343 = vld [vmem:[#allocation2 + $0x600] sm:$0xff]
    %v344 = vld [vmem:[#allocation2 + $0x608] sm:$0xff]
    %v345 = vld [vmem:[#allocation2 + $0x610] sm:$0xff]
    %v346 = vld [vmem:[#allocation2 + $0x618] sm:$0xff]
    %v347 = vld [vmem:[#allocation2 + $0x620] sm:$0xff]
    %v348 = vld [vmem:[#allocation2 + $0x628] sm:$0xff]
    %v349 = vld [vmem:[#allocation2 + $0x630] sm:$0xff]
    %v350 = vld [vmem:[#allocation2 + $0x638] sm:$0xff]
    %v351 = vld [vmem:[#allocation2 + $0x640] sm:$0xff]
    %v352 = vld [vmem:[#allocation2 + $0x648] sm:$0xff]
    %v353 = vld [vmem:[#allocation2 + $0x650] sm:$0xff]
    %v354 = vld [vmem:[#allocation2 + $0x658] sm:$0xff]
    %v355 = vld [vmem:[#allocation2 + $0x660] sm:$0xff]
    %v356 = vld [vmem:[#allocation2 + $0x668] sm:$0xff]
    %v357 = vld [vmem:[#allocation2 + $0x670] sm:$0xff]
    %v358 = vld [vmem:[#allocation2 + $0x678] sm:$0xff]
    %v359 = vld [vmem:[#allocation2 + $0x680] sm:$0xff]
    %v360 = vld [vmem:[#allocation2 + $0x688] sm:$0xff]
    %v361 = vld [vmem:[#allocation2 + $0x690] sm:$0xff]
    %v362 = vld [vmem:[#allocation2 + $0x698] sm:$0xff]
    %v363 = vld [vmem:[#allocation2 + $0x6a0] sm:$0xff]
    %v364 = vld [vmem:[#allocation2 + $0x6a8] sm:$0xff]
    %v365 = vld [vmem:[#allocation2 + $0x6b0] sm:$0xff]
    %v366 = vld [vmem:[#allocation2 + $0x6b8] sm:$0xff]
    %v367 = vld [vmem:[#allocation2 + $0x6c0] sm:$0xff]
    %v368 = vld [vmem:[#allocation2 + $0x6c8] sm:$0xff]
    %v369 = vld [vmem:[#allocation2 + $0x6d0] sm:$0xff]
    %v370 = vld [vmem:[#allocation2 + $0x6d8] sm:$0xff]
    %v371 = vld [vmem:[#allocation2 + $0x6e0] sm:$0xff]
    %v372 = vld [vmem:[#allocation2 + $0x6e8] sm:$0xff]
    %v373 = vld [vmem:[#allocation2 + $0x6f0] sm:$0xff]
    %v374 = vld [vmem:[#allocation2 + $0x6f8] sm:$0xff]
    %v375 = vld [vmem:[#allocation2 + $0x700] sm:$0xff]
    %v376 = vld [vmem:[#allocation2 + $0x708] sm:$0xff]
    %v377 = vld [vmem:[#allocation2 + $0x710] sm:$0xff]
    %v378 = vld [vmem:[#allocation2 + $0x718] sm:$0xff]
    %v379 = vld [vmem:[#allocation2 + $0x720] sm:$0xff]
    %v380 = vld [vmem:[#allocation2 + $0x728] sm:$0xff]
    %v381 = vld [vmem:[#allocation2 + $0x730] sm:$0xff]
    %v382 = vld [vmem:[#allocation2 + $0x738] sm:$0xff]
    %v383 = vld [vmem:[#allocation2 + $0x740] sm:$0xff]
    %v384 = vld [vmem:[#allocation2 + $0x748] sm:$0xff]
    %v385 = vld [vmem:[#allocation2 + $0x750] sm:$0xff]
    %v386 = vld [vmem:[#allocation2 + $0x758] sm:$0xff]
    %v387 = vld [vmem:[#allocation2 + $0x760] sm:$0xff]
    %v388 = vld [vmem:[#allocation2 + $0x768] sm:$0xff]
    %v389 = vld [vmem:[#allocation2 + $0x770] sm:$0xff]
    %v390 = vld [vmem:[#allocation2 + $0x778] sm:$0xff]
    %v391 = vld [vmem:[#allocation2 + $0x780] sm:$0xff]
    %v392 = vld [vmem:[#allocation2 + $0x788] sm:$0xff]
    %v393 = vld [vmem:[#allocation2 + $0x790] sm:$0xff]
    %v394 = vld [vmem:[#allocation2 + $0x798] sm:$0xff]
    %v395 = vld [vmem:[#allocation2 + $0x7a0] sm:$0xff]
    %v396 = vld [vmem:[#allocation2 + $0x7a8] sm:$0xff]
    %v397 = vld [vmem:[#allocation2 + $0x7b0] sm:$0xff]
    %v398 = vld [vmem:[#allocation2 + $0x7b8] sm:$0xff]
    %v399 = vld [vmem:[#allocation2 + $0x7c0] sm:$0xff]
    %v400 = vld [vmem:[#allocation2 + $0x7c8] sm:$0xff]
    %v401 = vld [vmem:[#allocation2 + $0x7d0] sm:$0xff]
    %v402 = vld [vmem:[#allocation2 + $0x7d8] sm:$0xff]
    %v403 = vld [vmem:[#allocation2 + $0x7e0] sm:$0xff]
    %v404 = vld [vmem:[#allocation2 + $0x7e8] sm:$0xff]
    %v405 = vld [vmem:[#allocation2 + $0x7f0] sm:$0xff]
    %v406 = vld [vmem:[#allocation2 + $0x7f8] sm:$0xff]
    %v407 = vld [vmem:[#allocation5] sm:$0xff]
    %v409 = vperm.slane %v407, 0
    %v410 = vperm.slane %v407, 1
    %v411 = vperm.slane %v407, 2
    %v412 = vperm.slane %v407, 3
    %v413 = vperm.slane %v407, 4
    %v414 = vperm.slane %v407, 5
    %v415 = vperm.slane %v407, 6
    %v416 = vperm.slane %v407, 7
    %426 = vst [vmem:[#allocation1] ss:$4 sm:$0xff] %v150
    %v427 = vld.sshfl [vmem:[#allocation1] sm:$0xff pattern:$0x73625140]
    %v428 = vld.sshfl [vmem:[#allocation1 + $0x8] sm:$0xff pattern:$0x73625140]
    %431 = vmatpush.msra.mxu0 %v271
    %432 = vmatpush.msra.mxu0 %v263
    %433 = vmatpush.msra.mxu0 %v255
    %434 = vmatpush.msra.mxu0 %v247
    %435 = vmatpush.msra.mxu0 %v239
    %436 = vmatpush.msra.mxu0 %v231
    %437 = vmatpush.msra.mxu0 %v223
    %438 = vmatpush.msra.mxu0 %v215
    %439 = vmatpush.msra.mxu0 %v207
    %440 = vmatpush.msra.mxu0 %v199
    %441 = vmatpush.msra.mxu0 %v191
    %442 = vmatpush.msra.mxu0 %v183
    %443 = vmatpush.msra.mxu0 %v175
    %444 = vmatpush.msra.mxu0 %v167
    %445 = vmatpush.msra.mxu0 %v159
    %446 = vmatpush.msra.mxu0 %v151
    %447 = vmatmul.f32.gmra.mxu0 %v427
    %v448 = vpop.f32.mrf.mxu0
    %v449 = vadd.f32 %v409, %v448
    %450 = vdwg.mxu0
    %451 = vmatpush.msra.mxu0 %v399
    %452 = vmatpush.msra.mxu0 %v391
    %453 = vmatpush.msra.mxu0 %v383
    %454 = vmatpush.msra.mxu0 %v375
    %455 = vmatpush.msra.mxu0 %v367
    %456 = vmatpush.msra.mxu0 %v359
    %457 = vmatpush.msra.mxu0 %v351
    %458 = vmatpush.msra.mxu0 %v343
    %459 = vmatpush.msra.mxu0 %v335
    %460 = vmatpush.msra.mxu0 %v327
    %461 = vmatpush.msra.mxu0 %v319
    %462 = vmatpush.msra.mxu0 %v311
    %463 = vmatpush.msra.mxu0 %v303
    %464 = vmatpush.msra.mxu0 %v295
    %465 = vmatpush.msra.mxu0 %v287
    %466 = vmatpush.msra.mxu0 %v279
    %467 = vmatmul.f32.gmra.mxu0 %v428
    %v468 = vpop.f32.mrf.mxu0
    %v469 = vadd.f32 %v449, %v468
    %470 = vdwg.mxu0
    %471 = vmatpush.msra.mxu0 %v272
    %472 = vmatpush.msra.mxu0 %v264
    %473 = vmatpush.msra.mxu0 %v256
    %474 = vmatpush.msra.mxu0 %v248
    %475 = vmatpush.msra.mxu0 %v240
    %476 = vmatpush.msra.mxu0 %v232
    %477 = vmatpush.msra.mxu0 %v224
    %478 = vmatpush.msra.mxu0 %v216
    %479 = vmatpush.msra.mxu0 %v208
    %480 = vmatpush.msra.mxu0 %v200
    %481 = vmatpush.msra.mxu0 %v192
    %482 = vmatpush.msra.mxu0 %v184
    %483 = vmatpush.msra.mxu0 %v176
    %484 = vmatpush.msra.mxu0 %v168
    %485 = vmatpush.msra.mxu0 %v160
    %486 = vmatpush.msra.mxu0 %v152
    %487 = vmatmul.f32.gmra.mxu0 %v427
    %v488 = vpop.f32.mrf.mxu0
    %v489 = vadd.f32 %v410, %v488
    %490 = vdwg.mxu0
    %491 = vmatpush.msra.mxu0 %v400
    %492 = vmatpush.msra.mxu0 %v392
    %493 = vmatpush.msra.mxu0 %v384
    %494 = vmatpush.msra.mxu0 %v376
    %495 = vmatpush.msra.mxu0 %v368
    %496 = vmatpush.msra.mxu0 %v360
    %497 = vmatpush.msra.mxu0 %v352
    %498 = vmatpush.msra.mxu0 %v344
    %499 = vmatpush.msra.mxu0 %v336
    %500 = vmatpush.msra.mxu0 %v328
    %501 = vmatpush.msra.mxu0 %v320
    %502 = vmatpush.msra.mxu0 %v312
    %503 = vmatpush.msra.mxu0 %v304
    %504 = vmatpush.msra.mxu0 %v296
    %505 = vmatpush.msra.mxu0 %v288
    %506 = vmatpush.msra.mxu0 %v280
    %507 = vmatmul.f32.gmra.mxu0 %v428
    %v508 = vpop.f32.mrf.mxu0
    %v509 = vadd.f32 %v489, %v508
    %510 = vdwg.mxu0
    %511 = vmatpush.msra.mxu0 %v273
    %512 = vmatpush.msra.mxu0 %v265
    %513 = vmatpush.msra.mxu0 %v257
    %514 = vmatpush.msra.mxu0 %v249
    %515 = vmatpush.msra.mxu0 %v241
    %516 = vmatpush.msra.mxu0 %v233
    %517 = vmatpush.msra.mxu0 %v225
    %518 = vmatpush.msra.mxu0 %v217
    %519 = vmatpush.msra.mxu0 %v209
    %520 = vmatpush.msra.mxu0 %v201
    %521 = vmatpush.msra.mxu0 %v193
    %522 = vmatpush.msra.mxu0 %v185
    %523 = vmatpush.msra.mxu0 %v177
    %524 = vmatpush.msra.mxu0 %v169
    %525 = vmatpush.msra.mxu0 %v161
    %526 = vmatpush.msra.mxu0 %v153
    %527 = vmatmul.f32.gmra.mxu0 %v427
    %v528 = vpop.f32.mrf.mxu0
    %v529 = vadd.f32 %v411, %v528
    %530 = vdwg.mxu0
    %531 = vmatpush.msra.mxu0 %v401
    %532 = vmatpush.msra.mxu0 %v393
    %533 = vmatpush.msra.mxu0 %v385
    %534 = vmatpush.msra.mxu0 %v377
    %535 = vmatpush.msra.mxu0 %v369
    %536 = vmatpush.msra.mxu0 %v361
    %537 = vmatpush.msra.mxu0 %v353
    %538 = vmatpush.msra.mxu0 %v345
    %539 = vmatpush.msra.mxu0 %v337
    %540 = vmatpush.msra.mxu0 %v329
    %541 = vmatpush.msra.mxu0 %v321
    %542 = vmatpush.msra.mxu0 %v313
    %543 = vmatpush.msra.mxu0 %v305
    %544 = vmatpush.msra.mxu0 %v297
    %545 = vmatpush.msra.mxu0 %v289
    %546 = vmatpush.msra.mxu0 %v281
    %547 = vmatmul.f32.gmra.mxu0 %v428
    %v548 = vpop.f32.mrf.mxu0
    %v549 = vadd.f32 %v529, %v548
    %550 = vdwg.mxu0
    %551 = vmatpush.msra.mxu0 %v274
    %552 = vmatpush.msra.mxu0 %v266
    %553 = vmatpush.msra.mxu0 %v258
    %554 = vmatpush.msra.mxu0 %v250
    %555 = vmatpush.msra.mxu0 %v242
    %556 = vmatpush.msra.mxu0 %v234
    %557 = vmatpush.msra.mxu0 %v226
    %558 = vmatpush.msra.mxu0 %v218
    %559 = vmatpush.msra.mxu0 %v210
    %560 = vmatpush.msra.mxu0 %v202
    %561 = vmatpush.msra.mxu0 %v194
    %562 = vmatpush.msra.mxu0 %v186
    %563 = vmatpush.msra.mxu0 %v178
    %564 = vmatpush.msra.mxu0 %v170
    %565 = vmatpush.msra.mxu0 %v162
    %566 = vmatpush.msra.mxu0 %v154
    %567 = vmatmul.f32.gmra.mxu0 %v427
    %v568 = vpop.f32.mrf.mxu0
    %v569 = vadd.f32 %v412, %v568
    %570 = vdwg.mxu0
    %571 = vmatpush.msra.mxu0 %v402
    %572 = vmatpush.msra.mxu0 %v394
    %573 = vmatpush.msra.mxu0 %v386
    %574 = vmatpush.msra.mxu0 %v378
    %575 = vmatpush.msra.mxu0 %v370
    %576 = vmatpush.msra.mxu0 %v362
    %577 = vmatpush.msra.mxu0 %v354
    %578 = vmatpush.msra.mxu0 %v346
    %579 = vmatpush.msra.mxu0 %v338
    %580 = vmatpush.msra.mxu0 %v330
    %581 = vmatpush.msra.mxu0 %v322
    %582 = vmatpush.msra.mxu0 %v314
    %583 = vmatpush.msra.mxu0 %v306
    %584 = vmatpush.msra.mxu0 %v298
    %585 = vmatpush.msra.mxu0 %v290
    %586 = vmatpush.msra.mxu0 %v282
    %587 = vmatmul.f32.gmra.mxu0 %v428
    %v588 = vpop.f32.mrf.mxu0
    %v589 = vadd.f32 %v569, %v588
    %590 = vdwg.mxu0
    %591 = vmatpush.msra.mxu0 %v275
    %592 = vmatpush.msra.mxu0 %v267
    %593 = vmatpush.msra.mxu0 %v259
    %594 = vmatpush.msra.mxu0 %v251
    %595 = vmatpush.msra.mxu0 %v243
    %596 = vmatpush.msra.mxu0 %v235
    %597 = vmatpush.msra.mxu0 %v227
    %598 = vmatpush.msra.mxu0 %v219
    %599 = vmatpush.msra.mxu0 %v211
    %600 = vmatpush.msra.mxu0 %v203
    %601 = vmatpush.msra.mxu0 %v195
    %602 = vmatpush.msra.mxu0 %v187
    %603 = vmatpush.msra.mxu0 %v179
    %604 = vmatpush.msra.mxu0 %v171
    %605 = vmatpush.msra.mxu0 %v163
    %606 = vmatpush.msra.mxu0 %v155
    %607 = vmatmul.f32.gmra.mxu0 %v427
    %v608 = vpop.f32.mrf.mxu0
    %v609 = vadd.f32 %v413, %v608
    %610 = vdwg.mxu0
    %611 = vmatpush.msra.mxu0 %v403
    %612 = vmatpush.msra.mxu0 %v395
    %613 = vmatpush.msra.mxu0 %v387
    %614 = vmatpush.msra.mxu0 %v379
    %615 = vmatpush.msra.mxu0 %v371
    %616 = vmatpush.msra.mxu0 %v363
    %617 = vmatpush.msra.mxu0 %v355
    %618 = vmatpush.msra.mxu0 %v347
    %619 = vmatpush.msra.mxu0 %v339
    %620 = vmatpush.msra.mxu0 %v331
    %621 = vmatpush.msra.mxu0 %v323
    %622 = vmatpush.msra.mxu0 %v315
    %623 = vmatpush.msra.mxu0 %v307
    %624 = vmatpush.msra.mxu0 %v299
    %625 = vmatpush.msra.mxu0 %v291
    %626 = vmatpush.msra.mxu0 %v283
    %627 = vmatmul.f32.gmra.mxu0 %v428
    %v628 = vpop.f32.mrf.mxu0
    %v629 = vadd.f32 %v609, %v628
    %630 = vdwg.mxu0
    %631 = vmatpush.msra.mxu0 %v276
    %632 = vmatpush.msra.mxu0 %v268
    %633 = vmatpush.msra.mxu0 %v260
    %634 = vmatpush.msra.mxu0 %v252
    %635 = vmatpush.msra.mxu0 %v244
    %636 = vmatpush.msra.mxu0 %v236
    %637 = vmatpush.msra.mxu0 %v228
    %638 = vmatpush.msra.mxu0 %v220
    %639 = vmatpush.msra.mxu0 %v212
    %640 = vmatpush.msra.mxu0 %v204
    %641 = vmatpush.msra.mxu0 %v196
    %642 = vmatpush.msra.mxu0 %v188
    %643 = vmatpush.msra.mxu0 %v180
    %644 = vmatpush.msra.mxu0 %v172
    %645 = vmatpush.msra.mxu0 %v164
    %646 = vmatpush.msra.mxu0 %v156
    %647 = vmatmul.f32.gmra.mxu0 %v427
    %v648 = vpop.f32.mrf.mxu0
    %v649 = vadd.f32 %v414, %v648
    %650 = vdwg.mxu0
    %651 = vmatpush.msra.mxu0 %v404
    %652 = vmatpush.msra.mxu0 %v396
    %653 = vmatpush.msra.mxu0 %v388
    %654 = vmatpush.msra.mxu0 %v380
    %655 = vmatpush.msra.mxu0 %v372
    %656 = vmatpush.msra.mxu0 %v364
    %657 = vmatpush.msra.mxu0 %v356
    %658 = vmatpush.msra.mxu0 %v348
    %659 = vmatpush.msra.mxu0 %v340
    %660 = vmatpush.msra.mxu0 %v332
    %661 = vmatpush.msra.mxu0 %v324
    %662 = vmatpush.msra.mxu0 %v316
    %663 = vmatpush.msra.mxu0 %v308
    %664 = vmatpush.msra.mxu0 %v300
    %665 = vmatpush.msra.mxu0 %v292
    %666 = vmatpush.msra.mxu0 %v284
    %667 = vmatmul.f32.gmra.mxu0 %v428
    %v668 = vpop.f32.mrf.mxu0
    %v669 = vadd.f32 %v649, %v668
    %670 = vdwg.mxu0
    %671 = vmatpush.msra.mxu0 %v277
    %672 = vmatpush.msra.mxu0 %v269
    %673 = vmatpush.msra.mxu0 %v261
    %674 = vmatpush.msra.mxu0 %v253
    %675 = vmatpush.msra.mxu0 %v245
    %676 = vmatpush.msra.mxu0 %v237
    %677 = vmatpush.msra.mxu0 %v229
    %678 = vmatpush.msra.mxu0 %v221
    %679 = vmatpush.msra.mxu0 %v213
    %680 = vmatpush.msra.mxu0 %v205
    %681 = vmatpush.msra.mxu0 %v197
    %682 = vmatpush.msra.mxu0 %v189
    %683 = vmatpush.msra.mxu0 %v181
    %684 = vmatpush.msra.mxu0 %v173
    %685 = vmatpush.msra.mxu0 %v165
    %686 = vmatpush.msra.mxu0 %v157
    %687 = vmatmul.f32.gmra.mxu0 %v427
    %v688 = vpop.f32.mrf.mxu0
    %v689 = vadd.f32 %v415, %v688
    %690 = vdwg.mxu0
    %691 = vmatpush.msra.mxu0 %v405
    %692 = vmatpush.msra.mxu0 %v397
    %693 = vmatpush.msra.mxu0 %v389
    %694 = vmatpush.msra.mxu0 %v381
    %695 = vmatpush.msra.mxu0 %v373
    %696 = vmatpush.msra.mxu0 %v365
    %697 = vmatpush.msra.mxu0 %v357
    %698 = vmatpush.msra.mxu0 %v349
    %699 = vmatpush.msra.mxu0 %v341
    %700 = vmatpush.msra.mxu0 %v333
    %701 = vmatpush.msra.mxu0 %v325
    %702 = vmatpush.msra.mxu0 %v317
    %703 = vmatpush.msra.mxu0 %v309
    %704 = vmatpush.msra.mxu0 %v301
    %705 = vmatpush.msra.mxu0 %v293
    %706 = vmatpush.msra.mxu0 %v285
    %707 = vmatmul.f32.gmra.mxu0 %v428
    %v708 = vpop.f32.mrf.mxu0
    %v709 = vadd.f32 %v689, %v708
    %710 = vdwg.mxu0
    %711 = vmatpush.msra.mxu0 %v278
    %712 = vmatpush.msra.mxu0 %v270
    %713 = vmatpush.msra.mxu0 %v262
    %714 = vmatpush.msra.mxu0 %v254
    %715 = vmatpush.msra.mxu0 %v246
    %716 = vmatpush.msra.mxu0 %v238
    %717 = vmatpush.msra.mxu0 %v230
    %718 = vmatpush.msra.mxu0 %v222
    %719 = vmatpush.msra.mxu0 %v214
    %720 = vmatpush.msra.mxu0 %v206
    %721 = vmatpush.msra.mxu0 %v198
    %722 = vmatpush.msra.mxu0 %v190
    %723 = vmatpush.msra.mxu0 %v182
    %724 = vmatpush.msra.mxu0 %v174
    %725 = vmatpush.msra.mxu0 %v166
    %726 = vmatpush.msra.mxu0 %v158
    %727 = vmatmul.f32.gmra.mxu0 %v427
    %v728 = vpop.f32.mrf.mxu0
    %v729 = vadd.f32 %v416, %v728
    %730 = vdwg.mxu0
    %731 = vmatpush.msra.mxu0 %v406
    %732 = vmatpush.msra.mxu0 %v398
    %733 = vmatpush.msra.mxu0 %v390
    %734 = vmatpush.msra.mxu0 %v382
    %735 = vmatpush.msra.mxu0 %v374
    %736 = vmatpush.msra.mxu0 %v366
    %737 = vmatpush.msra.mxu0 %v358
    %738 = vmatpush.msra.mxu0 %v350
    %739 = vmatpush.msra.mxu0 %v342
    %740 = vmatpush.msra.mxu0 %v334
    %741 = vmatpush.msra.mxu0 %v326
    %742 = vmatpush.msra.mxu0 %v318
    %743 = vmatpush.msra.mxu0 %v310
    %744 = vmatpush.msra.mxu0 %v302
    %745 = vmatpush.msra.mxu0 %v294
    %746 = vmatpush.msra.mxu0 %v286
    %747 = vmatmul.f32.gmra.mxu0 %v428
    %v748 = vpop.f32.mrf.mxu0
    %v749 = vadd.f32 %v729, %v748
    %750 = vdwg.mxu0
    %v751 = vmax.f32 %v469, 0.0
    %v752 = vmax.f32 %v509, 0.0
    %v753 = vmax.f32 %v549, 0.0
    %v754 = vmax.f32 %v589, 0.0
    %v755 = vmax.f32 %v629, 0.0
    %v756 = vmax.f32 %v669, 0.0
    %v757 = vmax.f32 %v709, 0.0
    %v758 = vmax.f32 %v749, 0.0
    %v759 = vld [vmem:[#allocation7] sm:$0xff]
    %v760 = vld [vmem:[#allocation7 + $0x8] sm:$0xff]
    %v761 = vld [vmem:[#allocation7 + $0x10] sm:$0xff]
    %v762 = vld [vmem:[#allocation7 + $0x18] sm:$0xff]
    %v763 = vld [vmem:[#allocation7 + $0x20] sm:$0xff]
    %v764 = vld [vmem:[#allocation7 + $0x28] sm:$0xff]
    %v765 = vld [vmem:[#allocation7 + $0x30] sm:$0xff]
    %v766 = vld [vmem:[#allocation7 + $0x38] sm:$0xff]
    %v767 = vld [vmem:[#allocation7 + $0x40] sm:$0xff]
    %v768 = vld [vmem:[#allocation7 + $0x48] sm:$0xff]
    %v769 = vld [vmem:[#allocation7 + $0x50] sm:$0xff]
    %v770 = vld [vmem:[#allocation7 + $0x58] sm:$0xff]
    %v771 = vld [vmem:[#allocation7 + $0x60] sm:$0xff]
    %v772 = vld [vmem:[#allocation7 + $0x68] sm:$0xff]
    %v773 = vld [vmem:[#allocation7 + $0x70] sm:$0xff]
    %v774 = vld [vmem:[#allocation7 + $0x78] sm:$0xff]
    %v775 = vld [vmem:[#allocation7 + $0x80] sm:$0xff]
    %v776 = vld [vmem:[#allocation7 + $0x88] sm:$0xff]
    %v777 = vld [vmem:[#allocation7 + $0x90] sm:$0xff]
    %v778 = vld [vmem:[#allocation7 + $0x98] sm:$0xff]
    %v779 = vld [vmem:[#allocation7 + $0xa0] sm:$0xff]
    %v780 = vld [vmem:[#allocation7 + $0xa8] sm:$0xff]
    %v781 = vld [vmem:[#allocation7 + $0xb0] sm:$0xff]
    %v782 = vld [vmem:[#allocation7 + $0xb8] sm:$0xff]
    %v783 = vld [vmem:[#allocation7 + $0xc0] sm:$0xff]
    %v784 = vld [vmem:[#allocation7 + $0xc8] sm:$0xff]
    %v785 = vld [vmem:[#allocation7 + $0xd0] sm:$0xff]
    %v786 = vld [vmem:[#allocation7 + $0xd8] sm:$0xff]
    %v787 = vld [vmem:[#allocation7 + $0xe0] sm:$0xff]
    %v788 = vld [vmem:[#allocation7 + $0xe8] sm:$0xff]
    %v789 = vld [vmem:[#allocation7 + $0xf0] sm:$0xff]
    %v790 = vld [vmem:[#allocation7 + $0xf8] sm:$0xff]
    %v791 = vld [vmem:[#allocation7 + $0x100] sm:$0xff]
    %v792 = vld [vmem:[#allocation7 + $0x108] sm:$0xff]
    %v793 = vld [vmem:[#allocation7 + $0x110] sm:$0xff]
    %v794 = vld [vmem:[#allocation7 + $0x118] sm:$0xff]
    %v795 = vld [vmem:[#allocation7 + $0x120] sm:$0xff]
    %v796 = vld [vmem:[#allocation7 + $0x128] sm:$0xff]
    %v797 = vld [vmem:[#allocation7 + $0x130] sm:$0xff]
    %v798 = vld [vmem:[#allocation7 + $0x138] sm:$0xff]
    %v799 = vld [vmem:[#allocation7 + $0x140] sm:$0xff]
    %v800 = vld [vmem:[#allocation7 + $0x148] sm:$0xff]
    %v801 = vld [vmem:[#allocation7 + $0x150] sm:$0xff]
    %v802 = vld [vmem:[#allocation7 + $0x158] sm:$0xff]
    %v803 = vld [vmem:[#allocation7 + $0x160] sm:$0xff]
    %v804 = vld [vmem:[#allocation7 + $0x168] sm:$0xff]
    %v805 = vld [vmem:[#allocation7 + $0x170] sm:$0xff]
    %v806 = vld [vmem:[#allocation7 + $0x178] sm:$0xff]
    %v807 = vld [vmem:[#allocation7 + $0x180] sm:$0xff]
    %v808 = vld [vmem:[#allocation7 + $0x188] sm:$0xff]
    %v809 = vld [vmem:[#allocation7 + $0x190] sm:$0xff]
    %v810 = vld [vmem:[#allocation7 + $0x198] sm:$0xff]
    %v811 = vld [vmem:[#allocation7 + $0x1a0] sm:$0xff]
    %v812 = vld [vmem:[#allocation7 + $0x1a8] sm:$0xff]
    %v813 = vld [vmem:[#allocation7 + $0x1b0] sm:$0xff]
    %v814 = vld [vmem:[#allocation7 + $0x1b8] sm:$0xff]
    %v815 = vld [vmem:[#allocation7 + $0x1c0] sm:$0xff]
    %v816 = vld [vmem:[#allocation7 + $0x1c8] sm:$0xff]
    %v817 = vld [vmem:[#allocation7 + $0x1d0] sm:$0xff]
    %v818 = vld [vmem:[#allocation7 + $0x1d8] sm:$0xff]
    %v819 = vld [vmem:[#allocation7 + $0x1e0] sm:$0xff]
    %v820 = vld [vmem:[#allocation7 + $0x1e8] sm:$0xff]
    %v821 = vld [vmem:[#allocation7 + $0x1f0] sm:$0xff]
    %v822 = vld [vmem:[#allocation7 + $0x1f8] sm:$0xff]
    %v823 = vld [vmem:[#allocation7 + $0x200] sm:$0xff]
    %v824 = vld [vmem:[#allocation7 + $0x208] sm:$0xff]
    %v825 = vld [vmem:[#allocation7 + $0x210] sm:$0xff]
    %v826 = vld [vmem:[#allocation7 + $0x218] sm:$0xff]
    %v827 = vld [vmem:[#allocation7 + $0x220] sm:$0xff]
    %v828 = vld [vmem:[#allocation7 + $0x228] sm:$0xff]
    %v829 = vld [vmem:[#allocation7 + $0x230] sm:$0xff]
    %v830 = vld [vmem:[#allocation7 + $0x238] sm:$0xff]
    %v831 = vld [vmem:[#allocation7 + $0x240] sm:$0xff]
    %v832 = vld [vmem:[#allocation7 + $0x248] sm:$0xff]
    %v833 = vld [vmem:[#allocation7 + $0x250] sm:$0xff]
    %v834 = vld [vmem:[#allocation7 + $0x258] sm:$0xff]
    %v835 = vld [vmem:[#allocation7 + $0x260] sm:$0xff]
    %v836 = vld [vmem:[#allocation7 + $0x268] sm:$0xff]
    %v837 = vld [vmem:[#allocation7 + $0x270] sm:$0xff]
    %v838 = vld [vmem:[#allocation7 + $0x278] sm:$0xff]
    %v839 = vld [vmem:[#allocation7 + $0x280] sm:$0xff]
    %v840 = vld [vmem:[#allocation7 + $0x288] sm:$0xff]
    %v841 = vld [vmem:[#allocation7 + $0x290] sm:$0xff]
    %v842 = vld [vmem:[#allocation7 + $0x298] sm:$0xff]
    %v843 = vld [vmem:[#allocation7 + $0x2a0] sm:$0xff]
    %v844 = vld [vmem:[#allocation7 + $0x2a8] sm:$0xff]
    %v845 = vld [vmem:[#allocation7 + $0x2b0] sm:$0xff]
    %v846 = vld [vmem:[#allocation7 + $0x2b8] sm:$0xff]
    %v847 = vld [vmem:[#allocation7 + $0x2c0] sm:$0xff]
    %v848 = vld [vmem:[#allocation7 + $0x2c8] sm:$0xff]
    %v849 = vld [vmem:[#allocation7 + $0x2d0] sm:$0xff]
    %v850 = vld [vmem:[#allocation7 + $0x2d8] sm:$0xff]
    %v851 = vld [vmem:[#allocation7 + $0x2e0] sm:$0xff]
    %v852 = vld [vmem:[#allocation7 + $0x2e8] sm:$0xff]
    %v853 = vld [vmem:[#allocation7 + $0x2f0] sm:$0xff]
    %v854 = vld [vmem:[#allocation7 + $0x2f8] sm:$0xff]
    %v855 = vld [vmem:[#allocation7 + $0x300] sm:$0xff]
    %v856 = vld [vmem:[#allocation7 + $0x308] sm:$0xff]
    %v857 = vld [vmem:[#allocation7 + $0x310] sm:$0xff]
    %v858 = vld [vmem:[#allocation7 + $0x318] sm:$0xff]
    %v859 = vld [vmem:[#allocation7 + $0x320] sm:$0xff]
    %v860 = vld [vmem:[#allocation7 + $0x328] sm:$0xff]
    %v861 = vld [vmem:[#allocation7 + $0x330] sm:$0xff]
    %v862 = vld [vmem:[#allocation7 + $0x338] sm:$0xff]
    %v863 = vld [vmem:[#allocation7 + $0x340] sm:$0xff]
    %v864 = vld [vmem:[#allocation7 + $0x348] sm:$0xff]
    %v865 = vld [vmem:[#allocation7 + $0x350] sm:$0xff]
    %v866 = vld [vmem:[#allocation7 + $0x358] sm:$0xff]
    %v867 = vld [vmem:[#allocation7 + $0x360] sm:$0xff]
    %v868 = vld [vmem:[#allocation7 + $0x368] sm:$0xff]
    %v869 = vld [vmem:[#allocation7 + $0x370] sm:$0xff]
    %v870 = vld [vmem:[#allocation7 + $0x378] sm:$0xff]
    %v871 = vld [vmem:[#allocation7 + $0x380] sm:$0xff]
    %v872 = vld [vmem:[#allocation7 + $0x388] sm:$0xff]
    %v873 = vld [vmem:[#allocation7 + $0x390] sm:$0xff]
    %v874 = vld [vmem:[#allocation7 + $0x398] sm:$0xff]
    %v875 = vld [vmem:[#allocation7 + $0x3a0] sm:$0xff]
    %v876 = vld [vmem:[#allocation7 + $0x3a8] sm:$0xff]
    %v877 = vld [vmem:[#allocation7 + $0x3b0] sm:$0xff]
    %v878 = vld [vmem:[#allocation7 + $0x3b8] sm:$0xff]
    %v879 = vld [vmem:[#allocation7 + $0x3c0] sm:$0xff]
    %v880 = vld [vmem:[#allocation7 + $0x3c8] sm:$0xff]
    %v881 = vld [vmem:[#allocation7 + $0x3d0] sm:$0xff]
    %v882 = vld [vmem:[#allocation7 + $0x3d8] sm:$0xff]
    %v883 = vld [vmem:[#allocation7 + $0x3e0] sm:$0xff]
    %v884 = vld [vmem:[#allocation7 + $0x3e8] sm:$0xff]
    %v885 = vld [vmem:[#allocation7 + $0x3f0] sm:$0xff]
    %v886 = vld [vmem:[#allocation7 + $0x3f8] sm:$0xff]
    %v887 = vld [vmem:[#allocation7 + $0x400] sm:$0xff]
    %v888 = vld [vmem:[#allocation7 + $0x408] sm:$0xff]
    %v889 = vld [vmem:[#allocation7 + $0x410] sm:$0xff]
    %v890 = vld [vmem:[#allocation7 + $0x418] sm:$0xff]
    %v891 = vld [vmem:[#allocation7 + $0x420] sm:$0xff]
    %v892 = vld [vmem:[#allocation7 + $0x428] sm:$0xff]
    %v893 = vld [vmem:[#allocation7 + $0x430] sm:$0xff]
    %v894 = vld [vmem:[#allocation7 + $0x438] sm:$0xff]
    %v895 = vld [vmem:[#allocation7 + $0x440] sm:$0xff]
    %v896 = vld [vmem:[#allocation7 + $0x448] sm:$0xff]
    %v897 = vld [vmem:[#allocation7 + $0x450] sm:$0xff]
    %v898 = vld [vmem:[#allocation7 + $0x458] sm:$0xff]
    %v899 = vld [vmem:[#allocation7 + $0x460] sm:$0xff]
    %v900 = vld [vmem:[#allocation7 + $0x468] sm:$0xff]
    %v901 = vld [vmem:[#allocation7 + $0x470] sm:$0xff]
    %v902 = vld [vmem:[#allocation7 + $0x478] sm:$0xff]
    %v903 = vld [vmem:[#allocation7 + $0x480] sm:$0xff]
    %v904 = vld [vmem:[#allocation7 + $0x488] sm:$0xff]
    %v905 = vld [vmem:[#allocation7 + $0x490] sm:$0xff]
    %v906 = vld [vmem:[#allocation7 + $0x498] sm:$0xff]
    %v907 = vld [vmem:[#allocation7 + $0x4a0] sm:$0xff]
    %v908 = vld [vmem:[#allocation7 + $0x4a8] sm:$0xff]
    %v909 = vld [vmem:[#allocation7 + $0x4b0] sm:$0xff]
    %v910 = vld [vmem:[#allocation7 + $0x4b8] sm:$0xff]
    %v911 = vld [vmem:[#allocation7 + $0x4c0] sm:$0xff]
    %v912 = vld [vmem:[#allocation7 + $0x4c8] sm:$0xff]
    %v913 = vld [vmem:[#allocation7 + $0x4d0] sm:$0xff]
    %v914 = vld [vmem:[#allocation7 + $0x4d8] sm:$0xff]
    %v915 = vld [vmem:[#allocation7 + $0x4e0] sm:$0xff]
    %v916 = vld [vmem:[#allocation7 + $0x4e8] sm:$0xff]
    %v917 = vld [vmem:[#allocation7 + $0x4f0] sm:$0xff]
    %v918 = vld [vmem:[#allocation7 + $0x4f8] sm:$0xff]
    %v919 = vld [vmem:[#allocation7 + $0x500] sm:$0xff]
    %v920 = vld [vmem:[#allocation7 + $0x508] sm:$0xff]
    %v921 = vld [vmem:[#allocation7 + $0x510] sm:$0xff]
    %v922 = vld [vmem:[#allocation7 + $0x518] sm:$0xff]
    %v923 = vld [vmem:[#allocation7 + $0x520] sm:$0xff]
    %v924 = vld [vmem:[#allocation7 + $0x528] sm:$0xff]
    %v925 = vld [vmem:[#allocation7 + $0x530] sm:$0xff]
    %v926 = vld [vmem:[#allocation7 + $0x538] sm:$0xff]
    %v927 = vld [vmem:[#allocation7 + $0x540] sm:$0xff]
    %v928 = vld [vmem:[#allocation7 + $0x548] sm:$0xff]
    %v929 = vld [vmem:[#allocation7 + $0x550] sm:$0xff]
    %v930 = vld [vmem:[#allocation7 + $0x558] sm:$0xff]
    %v931 = vld [vmem:[#allocation7 + $0x560] sm:$0xff]
    %v932 = vld [vmem:[#allocation7 + $0x568] sm:$0xff]
    %v933 = vld [vmem:[#allocation7 + $0x570] sm:$0xff]
    %v934 = vld [vmem:[#allocation7 + $0x578] sm:$0xff]
    %v935 = vld [vmem:[#allocation7 + $0x580] sm:$0xff]
    %v936 = vld [vmem:[#allocation7 + $0x588] sm:$0xff]
    %v937 = vld [vmem:[#allocation7 + $0x590] sm:$0xff]
    %v938 = vld [vmem:[#allocation7 + $0x598] sm:$0xff]
    %v939 = vld [vmem:[#allocation7 + $0x5a0] sm:$0xff]
    %v940 = vld [vmem:[#allocation7 + $0x5a8] sm:$0xff]
    %v941 = vld [vmem:[#allocation7 + $0x5b0] sm:$0xff]
    %v942 = vld [vmem:[#allocation7 + $0x5b8] sm:$0xff]
    %v943 = vld [vmem:[#allocation7 + $0x5c0] sm:$0xff]
    %v944 = vld [vmem:[#allocation7 + $0x5c8] sm:$0xff]
    %v945 = vld [vmem:[#allocation7 + $0x5d0] sm:$0xff]
    %v946 = vld [vmem:[#allocation7 + $0x5d8] sm:$0xff]
    %v947 = vld [vmem:[#allocation7 + $0x5e0] sm:$0xff]
    %v948 = vld [vmem:[#allocation7 + $0x5e8] sm:$0xff]
    %v949 = vld [vmem:[#allocation7 + $0x5f0] sm:$0xff]
    %v950 = vld [vmem:[#allocation7 + $0x5f8] sm:$0xff]
    %v951 = vld [vmem:[#allocation7 + $0x600] sm:$0xff]
    %v952 = vld [vmem:[#allocation7 + $0x608] sm:$0xff]
    %v953 = vld [vmem:[#allocation7 + $0x610] sm:$0xff]
    %v954 = vld [vmem:[#allocation7 + $0x618] sm:$0xff]
    %v955 = vld [vmem:[#allocation7 + $0x620] sm:$0xff]
    %v956 = vld [vmem:[#allocation7 + $0x628] sm:$0xff]
    %v957 = vld [vmem:[#allocation7 + $0x630] sm:$0xff]
    %v958 = vld [vmem:[#allocation7 + $0x638] sm:$0xff]
    %v959 = vld [vmem:[#allocation7 + $0x640] sm:$0xff]
    %v960 = vld [vmem:[#allocation7 + $0x648] sm:$0xff]
    %v961 = vld [vmem:[#allocation7 + $0x650] sm:$0xff]
    %v962 = vld [vmem:[#allocation7 + $0x658] sm:$0xff]
    %v963 = vld [vmem:[#allocation7 + $0x660] sm:$0xff]
    %v964 = vld [vmem:[#allocation7 + $0x668] sm:$0xff]
    %v965 = vld [vmem:[#allocation7 + $0x670] sm:$0xff]
    %v966 = vld [vmem:[#allocation7 + $0x678] sm:$0xff]
    %v967 = vld [vmem:[#allocation7 + $0x680] sm:$0xff]
    %v968 = vld [vmem:[#allocation7 + $0x688] sm:$0xff]
    %v969 = vld [vmem:[#allocation7 + $0x690] sm:$0xff]
    %v970 = vld [vmem:[#allocation7 + $0x698] sm:$0xff]
    %v971 = vld [vmem:[#allocation7 + $0x6a0] sm:$0xff]
    %v972 = vld [vmem:[#allocation7 + $0x6a8] sm:$0xff]
    %v973 = vld [vmem:[#allocation7 + $0x6b0] sm:$0xff]
    %v974 = vld [vmem:[#allocation7 + $0x6b8] sm:$0xff]
    %v975 = vld [vmem:[#allocation7 + $0x6c0] sm:$0xff]
    %v976 = vld [vmem:[#allocation7 + $0x6c8] sm:$0xff]
    %v977 = vld [vmem:[#allocation7 + $0x6d0] sm:$0xff]
    %v978 = vld [vmem:[#allocation7 + $0x6d8] sm:$0xff]
    %v979 = vld [vmem:[#allocation7 + $0x6e0] sm:$0xff]
    %v980 = vld [vmem:[#allocation7 + $0x6e8] sm:$0xff]
    %v981 = vld [vmem:[#allocation7 + $0x6f0] sm:$0xff]
    %v982 = vld [vmem:[#allocation7 + $0x6f8] sm:$0xff]
    %v983 = vld [vmem:[#allocation7 + $0x700] sm:$0xff]
    %v984 = vld [vmem:[#allocation7 + $0x708] sm:$0xff]
    %v985 = vld [vmem:[#allocation7 + $0x710] sm:$0xff]
    %v986 = vld [vmem:[#allocation7 + $0x718] sm:$0xff]
    %v987 = vld [vmem:[#allocation7 + $0x720] sm:$0xff]
    %v988 = vld [vmem:[#allocation7 + $0x728] sm:$0xff]
    %v989 = vld [vmem:[#allocation7 + $0x730] sm:$0xff]
    %v990 = vld [vmem:[#allocation7 + $0x738] sm:$0xff]
    %v991 = vld [vmem:[#allocation7 + $0x740] sm:$0xff]
    %v992 = vld [vmem:[#allocation7 + $0x748] sm:$0xff]
    %v993 = vld [vmem:[#allocation7 + $0x750] sm:$0xff]
    %v994 = vld [vmem:[#allocation7 + $0x758] sm:$0xff]
    %v995 = vld [vmem:[#allocation7 + $0x760] sm:$0xff]
    %v996 = vld [vmem:[#allocation7 + $0x768] sm:$0xff]
    %v997 = vld [vmem:[#allocation7 + $0x770] sm:$0xff]
    %v998 = vld [vmem:[#allocation7 + $0x778] sm:$0xff]
    %v999 = vld [vmem:[#allocation7 + $0x780] sm:$0xff]
    %v1000 = vld [vmem:[#allocation7 + $0x788] sm:$0xff]
    %v1001 = vld [vmem:[#allocation7 + $0x790] sm:$0xff]
    %v1002 = vld [vmem:[#allocation7 + $0x798] sm:$0xff]
    %v1003 = vld [vmem:[#allocation7 + $0x7a0] sm:$0xff]
    %v1004 = vld [vmem:[#allocation7 + $0x7a8] sm:$0xff]
    %v1005 = vld [vmem:[#allocation7 + $0x7b0] sm:$0xff]
    %v1006 = vld [vmem:[#allocation7 + $0x7b8] sm:$0xff]
    %v1007 = vld [vmem:[#allocation7 + $0x7c0] sm:$0xff]
    %v1008 = vld [vmem:[#allocation7 + $0x7c8] sm:$0xff]
    %v1009 = vld [vmem:[#allocation7 + $0x7d0] sm:$0xff]
    %v1010 = vld [vmem:[#allocation7 + $0x7d8] sm:$0xff]
    %v1011 = vld [vmem:[#allocation7 + $0x7e0] sm:$0xff]
    %v1012 = vld [vmem:[#allocation7 + $0x7e8] sm:$0xff]
    %v1013 = vld [vmem:[#allocation7 + $0x7f0] sm:$0xff]
    %v1014 = vld [vmem:[#allocation7 + $0x7f8] sm:$0xff]
    %v1015 = vld [vmem:[#allocation7 + $0x800] sm:$0xff]
    %v1016 = vld [vmem:[#allocation7 + $0x808] sm:$0xff]
    %v1017 = vld [vmem:[#allocation7 + $0x810] sm:$0xff]
    %v1018 = vld [vmem:[#allocation7 + $0x818] sm:$0xff]
    %v1019 = vld [vmem:[#allocation7 + $0x820] sm:$0xff]
    %v1020 = vld [vmem:[#allocation7 + $0x828] sm:$0xff]
    %v1021 = vld [vmem:[#allocation7 + $0x830] sm:$0xff]
    %v1022 = vld [vmem:[#allocation7 + $0x838] sm:$0xff]
    %v1023 = vld [vmem:[#allocation7 + $0x840] sm:$0xff]
    %v1024 = vld [vmem:[#allocation7 + $0x848] sm:$0xff]
    %v1025 = vld [vmem:[#allocation7 + $0x850] sm:$0xff]
    %v1026 = vld [vmem:[#allocation7 + $0x858] sm:$0xff]
    %v1027 = vld [vmem:[#allocation7 + $0x860] sm:$0xff]
    %v1028 = vld [vmem:[#allocation7 + $0x868] sm:$0xff]
    %v1029 = vld [vmem:[#allocation7 + $0x870] sm:$0xff]
    %v1030 = vld [vmem:[#allocation7 + $0x878] sm:$0xff]
    %v1031 = vld [vmem:[#allocation7 + $0x880] sm:$0xff]
    %v1032 = vld [vmem:[#allocation7 + $0x888] sm:$0xff]
    %v1033 = vld [vmem:[#allocation7 + $0x890] sm:$0xff]
    %v1034 = vld [vmem:[#allocation7 + $0x898] sm:$0xff]
    %v1035 = vld [vmem:[#allocation7 + $0x8a0] sm:$0xff]
    %v1036 = vld [vmem:[#allocation7 + $0x8a8] sm:$0xff]
    %v1037 = vld [vmem:[#allocation7 + $0x8b0] sm:$0xff]
    %v1038 = vld [vmem:[#allocation7 + $0x8b8] sm:$0xff]
    %v1039 = vld [vmem:[#allocation7 + $0x8c0] sm:$0xff]
    %v1040 = vld [vmem:[#allocation7 + $0x8c8] sm:$0xff]
    %v1041 = vld [vmem:[#allocation7 + $0x8d0] sm:$0xff]
    %v1042 = vld [vmem:[#allocation7 + $0x8d8] sm:$0xff]
    %v1043 = vld [vmem:[#allocation7 + $0x8e0] sm:$0xff]
    %v1044 = vld [vmem:[#allocation7 + $0x8e8] sm:$0xff]
    %v1045 = vld [vmem:[#allocation7 + $0x8f0] sm:$0xff]
    %v1046 = vld [vmem:[#allocation7 + $0x8f8] sm:$0xff]
    %v1047 = vld [vmem:[#allocation7 + $0x900] sm:$0xff]
    %v1048 = vld [vmem:[#allocation7 + $0x908] sm:$0xff]
    %v1049 = vld [vmem:[#allocation7 + $0x910] sm:$0xff]
    %v1050 = vld [vmem:[#allocation7 + $0x918] sm:$0xff]
    %v1051 = vld [vmem:[#allocation7 + $0x920] sm:$0xff]
    %v1052 = vld [vmem:[#allocation7 + $0x928] sm:$0xff]
    %v1053 = vld [vmem:[#allocation7 + $0x930] sm:$0xff]
    %v1054 = vld [vmem:[#allocation7 + $0x938] sm:$0xff]
    %v1055 = vld [vmem:[#allocation7 + $0x940] sm:$0xff]
    %v1056 = vld [vmem:[#allocation7 + $0x948] sm:$0xff]
    %v1057 = vld [vmem:[#allocation7 + $0x950] sm:$0xff]
    %v1058 = vld [vmem:[#allocation7 + $0x958] sm:$0xff]
    %v1059 = vld [vmem:[#allocation7 + $0x960] sm:$0xff]
    %v1060 = vld [vmem:[#allocation7 + $0x968] sm:$0xff]
    %v1061 = vld [vmem:[#allocation7 + $0x970] sm:$0xff]
    %v1062 = vld [vmem:[#allocation7 + $0x978] sm:$0xff]
    %v1063 = vld [vmem:[#allocation7 + $0x980] sm:$0xff]
    %v1064 = vld [vmem:[#allocation7 + $0x988] sm:$0xff]
    %v1065 = vld [vmem:[#allocation7 + $0x990] sm:$0xff]
    %v1066 = vld [vmem:[#allocation7 + $0x998] sm:$0xff]
    %v1067 = vld [vmem:[#allocation7 + $0x9a0] sm:$0xff]
    %v1068 = vld [vmem:[#allocation7 + $0x9a8] sm:$0xff]
    %v1069 = vld [vmem:[#allocation7 + $0x9b0] sm:$0xff]
    %v1070 = vld [vmem:[#allocation7 + $0x9b8] sm:$0xff]
    %v1071 = vld [vmem:[#allocation7 + $0x9c0] sm:$0xff]
    %v1072 = vld [vmem:[#allocation7 + $0x9c8] sm:$0xff]
    %v1073 = vld [vmem:[#allocation7 + $0x9d0] sm:$0xff]
    %v1074 = vld [vmem:[#allocation7 + $0x9d8] sm:$0xff]
    %v1075 = vld [vmem:[#allocation7 + $0x9e0] sm:$0xff]
    %v1076 = vld [vmem:[#allocation7 + $0x9e8] sm:$0xff]
    %v1077 = vld [vmem:[#allocation7 + $0x9f0] sm:$0xff]
    %v1078 = vld [vmem:[#allocation7 + $0x9f8] sm:$0xff]
    %v1079 = vld [vmem:[#allocation7 + $0xa00] sm:$0xff]
    %v1080 = vld [vmem:[#allocation7 + $0xa08] sm:$0xff]
    %v1081 = vld [vmem:[#allocation7 + $0xa10] sm:$0xff]
    %v1082 = vld [vmem:[#allocation7 + $0xa18] sm:$0xff]
    %v1083 = vld [vmem:[#allocation7 + $0xa20] sm:$0xff]
    %v1084 = vld [vmem:[#allocation7 + $0xa28] sm:$0xff]
    %v1085 = vld [vmem:[#allocation7 + $0xa30] sm:$0xff]
    %v1086 = vld [vmem:[#allocation7 + $0xa38] sm:$0xff]
    %v1087 = vld [vmem:[#allocation7 + $0xa40] sm:$0xff]
    %v1088 = vld [vmem:[#allocation7 + $0xa48] sm:$0xff]
    %v1089 = vld [vmem:[#allocation7 + $0xa50] sm:$0xff]
    %v1090 = vld [vmem:[#allocation7 + $0xa58] sm:$0xff]
    %v1091 = vld [vmem:[#allocation7 + $0xa60] sm:$0xff]
    %v1092 = vld [vmem:[#allocation7 + $0xa68] sm:$0xff]
    %v1093 = vld [vmem:[#allocation7 + $0xa70] sm:$0xff]
    %v1094 = vld [vmem:[#allocation7 + $0xa78] sm:$0xff]
    %v1095 = vld [vmem:[#allocation7 + $0xa80] sm:$0xff]
    %v1096 = vld [vmem:[#allocation7 + $0xa88] sm:$0xff]
    %v1097 = vld [vmem:[#allocation7 + $0xa90] sm:$0xff]
    %v1098 = vld [vmem:[#allocation7 + $0xa98] sm:$0xff]
    %v1099 = vld [vmem:[#allocation7 + $0xaa0] sm:$0xff]
    %v1100 = vld [vmem:[#allocation7 + $0xaa8] sm:$0xff]
    %v1101 = vld [vmem:[#allocation7 + $0xab0] sm:$0xff]
    %v1102 = vld [vmem:[#allocation7 + $0xab8] sm:$0xff]
    %v1103 = vld [vmem:[#allocation7 + $0xac0] sm:$0xff]
    %v1104 = vld [vmem:[#allocation7 + $0xac8] sm:$0xff]
    %v1105 = vld [vmem:[#allocation7 + $0xad0] sm:$0xff]
    %v1106 = vld [vmem:[#allocation7 + $0xad8] sm:$0xff]
    %v1107 = vld [vmem:[#allocation7 + $0xae0] sm:$0xff]
    %v1108 = vld [vmem:[#allocation7 + $0xae8] sm:$0xff]
    %v1109 = vld [vmem:[#allocation7 + $0xaf0] sm:$0xff]
    %v1110 = vld [vmem:[#allocation7 + $0xaf8] sm:$0xff]
    %v1111 = vld [vmem:[#allocation7 + $0xb00] sm:$0xff]
    %v1112 = vld [vmem:[#allocation7 + $0xb08] sm:$0xff]
    %v1113 = vld [vmem:[#allocation7 + $0xb10] sm:$0xff]
    %v1114 = vld [vmem:[#allocation7 + $0xb18] sm:$0xff]
    %v1115 = vld [vmem:[#allocation7 + $0xb20] sm:$0xff]
    %v1116 = vld [vmem:[#allocation7 + $0xb28] sm:$0xff]
    %v1117 = vld [vmem:[#allocation7 + $0xb30] sm:$0xff]
    %v1118 = vld [vmem:[#allocation7 + $0xb38] sm:$0xff]
    %v1119 = vld [vmem:[#allocation7 + $0xb40] sm:$0xff]
    %v1120 = vld [vmem:[#allocation7 + $0xb48] sm:$0xff]
    %v1121 = vld [vmem:[#allocation7 + $0xb50] sm:$0xff]
    %v1122 = vld [vmem:[#allocation7 + $0xb58] sm:$0xff]
    %v1123 = vld [vmem:[#allocation7 + $0xb60] sm:$0xff]
    %v1124 = vld [vmem:[#allocation7 + $0xb68] sm:$0xff]
    %v1125 = vld [vmem:[#allocation7 + $0xb70] sm:$0xff]
    %v1126 = vld [vmem:[#allocation7 + $0xb78] sm:$0xff]
    %v1127 = vld [vmem:[#allocation7 + $0xb80] sm:$0xff]
    %v1128 = vld [vmem:[#allocation7 + $0xb88] sm:$0xff]
    %v1129 = vld [vmem:[#allocation7 + $0xb90] sm:$0xff]
    %v1130 = vld [vmem:[#allocation7 + $0xb98] sm:$0xff]
    %v1131 = vld [vmem:[#allocation7 + $0xba0] sm:$0xff]
    %v1132 = vld [vmem:[#allocation7 + $0xba8] sm:$0xff]
    %v1133 = vld [vmem:[#allocation7 + $0xbb0] sm:$0xff]
    %v1134 = vld [vmem:[#allocation7 + $0xbb8] sm:$0xff]
    %v1135 = vld [vmem:[#allocation7 + $0xbc0] sm:$0xff]
    %v1136 = vld [vmem:[#allocation7 + $0xbc8] sm:$0xff]
    %v1137 = vld [vmem:[#allocation7 + $0xbd0] sm:$0xff]
    %v1138 = vld [vmem:[#allocation7 + $0xbd8] sm:$0xff]
    %v1139 = vld [vmem:[#allocation7 + $0xbe0] sm:$0xff]
    %v1140 = vld [vmem:[#allocation7 + $0xbe8] sm:$0xff]
    %v1141 = vld [vmem:[#allocation7 + $0xbf0] sm:$0xff]
    %v1142 = vld [vmem:[#allocation7 + $0xbf8] sm:$0xff]
    %v1143 = vld [vmem:[#allocation7 + $0xc00] sm:$0xff]
    %v1144 = vld [vmem:[#allocation7 + $0xc08] sm:$0xff]
    %v1145 = vld [vmem:[#allocation7 + $0xc10] sm:$0xff]
    %v1146 = vld [vmem:[#allocation7 + $0xc18] sm:$0xff]
    %v1147 = vld [vmem:[#allocation7 + $0xc20] sm:$0xff]
    %v1148 = vld [vmem:[#allocation7 + $0xc28] sm:$0xff]
    %v1149 = vld [vmem:[#allocation7 + $0xc30] sm:$0xff]
    %v1150 = vld [vmem:[#allocation7 + $0xc38] sm:$0xff]
    %v1151 = vld [vmem:[#allocation7 + $0xc40] sm:$0xff]
    %v1152 = vld [vmem:[#allocation7 + $0xc48] sm:$0xff]
    %v1153 = vld [vmem:[#allocation7 + $0xc50] sm:$0xff]
    %v1154 = vld [vmem:[#allocation7 + $0xc58] sm:$0xff]
    %v1155 = vld [vmem:[#allocation7 + $0xc60] sm:$0xff]
    %v1156 = vld [vmem:[#allocation7 + $0xc68] sm:$0xff]
    %v1157 = vld [vmem:[#allocation7 + $0xc70] sm:$0xff]
    %v1158 = vld [vmem:[#allocation7 + $0xc78] sm:$0xff]
    %v1159 = vld [vmem:[#allocation7 + $0xc80] sm:$0xff]
    %v1160 = vld [vmem:[#allocation7 + $0xc88] sm:$0xff]
    %v1161 = vld [vmem:[#allocation7 + $0xc90] sm:$0xff]
    %v1162 = vld [vmem:[#allocation7 + $0xc98] sm:$0xff]
    %v1163 = vld [vmem:[#allocation7 + $0xca0] sm:$0xff]
    %v1164 = vld [vmem:[#allocation7 + $0xca8] sm:$0xff]
    %v1165 = vld [vmem:[#allocation7 + $0xcb0] sm:$0xff]
    %v1166 = vld [vmem:[#allocation7 + $0xcb8] sm:$0xff]
    %v1167 = vld [vmem:[#allocation7 + $0xcc0] sm:$0xff]
    %v1168 = vld [vmem:[#allocation7 + $0xcc8] sm:$0xff]
    %v1169 = vld [vmem:[#allocation7 + $0xcd0] sm:$0xff]
    %v1170 = vld [vmem:[#allocation7 + $0xcd8] sm:$0xff]
    %v1171 = vld [vmem:[#allocation7 + $0xce0] sm:$0xff]
    %v1172 = vld [vmem:[#allocation7 + $0xce8] sm:$0xff]
    %v1173 = vld [vmem:[#allocation7 + $0xcf0] sm:$0xff]
    %v1174 = vld [vmem:[#allocation7 + $0xcf8] sm:$0xff]
    %v1175 = vld [vmem:[#allocation7 + $0xd00] sm:$0xff]
    %v1176 = vld [vmem:[#allocation7 + $0xd08] sm:$0xff]
    %v1177 = vld [vmem:[#allocation7 + $0xd10] sm:$0xff]
    %v1178 = vld [vmem:[#allocation7 + $0xd18] sm:$0xff]
    %v1179 = vld [vmem:[#allocation7 + $0xd20] sm:$0xff]
    %v1180 = vld [vmem:[#allocation7 + $0xd28] sm:$0xff]
    %v1181 = vld [vmem:[#allocation7 + $0xd30] sm:$0xff]
    %v1182 = vld [vmem:[#allocation7 + $0xd38] sm:$0xff]
    %v1183 = vld [vmem:[#allocation7 + $0xd40] sm:$0xff]
    %v1184 = vld [vmem:[#allocation7 + $0xd48] sm:$0xff]
    %v1185 = vld [vmem:[#allocation7 + $0xd50] sm:$0xff]
    %v1186 = vld [vmem:[#allocation7 + $0xd58] sm:$0xff]
    %v1187 = vld [vmem:[#allocation7 + $0xd60] sm:$0xff]
    %v1188 = vld [vmem:[#allocation7 + $0xd68] sm:$0xff]
    %v1189 = vld [vmem:[#allocation7 + $0xd70] sm:$0xff]
    %v1190 = vld [vmem:[#allocation7 + $0xd78] sm:$0xff]
    %v1191 = vld [vmem:[#allocation7 + $0xd80] sm:$0xff]
    %v1192 = vld [vmem:[#allocation7 + $0xd88] sm:$0xff]
    %v1193 = vld [vmem:[#allocation7 + $0xd90] sm:$0xff]
    %v1194 = vld [vmem:[#allocation7 + $0xd98] sm:$0xff]
    %v1195 = vld [vmem:[#allocation7 + $0xda0] sm:$0xff]
    %v1196 = vld [vmem:[#allocation7 + $0xda8] sm:$0xff]
    %v1197 = vld [vmem:[#allocation7 + $0xdb0] sm:$0xff]
    %v1198 = vld [vmem:[#allocation7 + $0xdb8] sm:$0xff]
    %v1199 = vld [vmem:[#allocation7 + $0xdc0] sm:$0xff]
    %v1200 = vld [vmem:[#allocation7 + $0xdc8] sm:$0xff]
    %v1201 = vld [vmem:[#allocation7 + $0xdd0] sm:$0xff]
    %v1202 = vld [vmem:[#allocation7 + $0xdd8] sm:$0xff]
    %v1203 = vld [vmem:[#allocation7 + $0xde0] sm:$0xff]
    %v1204 = vld [vmem:[#allocation7 + $0xde8] sm:$0xff]
    %v1205 = vld [vmem:[#allocation7 + $0xdf0] sm:$0xff]
    %v1206 = vld [vmem:[#allocation7 + $0xdf8] sm:$0xff]
    %v1207 = vld [vmem:[#allocation7 + $0xe00] sm:$0xff]
    %v1208 = vld [vmem:[#allocation7 + $0xe08] sm:$0xff]
    %v1209 = vld [vmem:[#allocation7 + $0xe10] sm:$0xff]
    %v1210 = vld [vmem:[#allocation7 + $0xe18] sm:$0xff]
    %v1211 = vld [vmem:[#allocation7 + $0xe20] sm:$0xff]
    %v1212 = vld [vmem:[#allocation7 + $0xe28] sm:$0xff]
    %v1213 = vld [vmem:[#allocation7 + $0xe30] sm:$0xff]
    %v1214 = vld [vmem:[#allocation7 + $0xe38] sm:$0xff]
    %v1215 = vld [vmem:[#allocation7 + $0xe40] sm:$0xff]
    %v1216 = vld [vmem:[#allocation7 + $0xe48] sm:$0xff]
    %v1217 = vld [vmem:[#allocation7 + $0xe50] sm:$0xff]
    %v1218 = vld [vmem:[#allocation7 + $0xe58] sm:$0xff]
    %v1219 = vld [vmem:[#allocation7 + $0xe60] sm:$0xff]
    %v1220 = vld [vmem:[#allocation7 + $0xe68] sm:$0xff]
    %v1221 = vld [vmem:[#allocation7 + $0xe70] sm:$0xff]
    %v1222 = vld [vmem:[#allocation7 + $0xe78] sm:$0xff]
    %v1223 = vld [vmem:[#allocation7 + $0xe80] sm:$0xff]
    %v1224 = vld [vmem:[#allocation7 + $0xe88] sm:$0xff]
    %v1225 = vld [vmem:[#allocation7 + $0xe90] sm:$0xff]
    %v1226 = vld [vmem:[#allocation7 + $0xe98] sm:$0xff]
    %v1227 = vld [vmem:[#allocation7 + $0xea0] sm:$0xff]
    %v1228 = vld [vmem:[#allocation7 + $0xea8] sm:$0xff]
    %v1229 = vld [vmem:[#allocation7 + $0xeb0] sm:$0xff]
    %v1230 = vld [vmem:[#allocation7 + $0xeb8] sm:$0xff]
    %v1231 = vld [vmem:[#allocation7 + $0xec0] sm:$0xff]
    %v1232 = vld [vmem:[#allocation7 + $0xec8] sm:$0xff]
    %v1233 = vld [vmem:[#allocation7 + $0xed0] sm:$0xff]
    %v1234 = vld [vmem:[#allocation7 + $0xed8] sm:$0xff]
    %v1235 = vld [vmem:[#allocation7 + $0xee0] sm:$0xff]
    %v1236 = vld [vmem:[#allocation7 + $0xee8] sm:$0xff]
    %v1237 = vld [vmem:[#allocation7 + $0xef0] sm:$0xff]
    %v1238 = vld [vmem:[#allocation7 + $0xef8] sm:$0xff]
    %v1239 = vld [vmem:[#allocation7 + $0xf00] sm:$0xff]
    %v1240 = vld [vmem:[#allocation7 + $0xf08] sm:$0xff]
    %v1241 = vld [vmem:[#allocation7 + $0xf10] sm:$0xff]
    %v1242 = vld [vmem:[#allocation7 + $0xf18] sm:$0xff]
    %v1243 = vld [vmem:[#allocation7 + $0xf20] sm:$0xff]
    %v1244 = vld [vmem:[#allocation7 + $0xf28] sm:$0xff]
    %v1245 = vld [vmem:[#allocation7 + $0xf30] sm:$0xff]
    %v1246 = vld [vmem:[#allocation7 + $0xf38] sm:$0xff]
    %v1247 = vld [vmem:[#allocation7 + $0xf40] sm:$0xff]
    %v1248 = vld [vmem:[#allocation7 + $0xf48] sm:$0xff]
    %v1249 = vld [vmem:[#allocation7 + $0xf50] sm:$0xff]
    %v1250 = vld [vmem:[#allocation7 + $0xf58] sm:$0xff]
    %v1251 = vld [vmem:[#allocation7 + $0xf60] sm:$0xff]
    %v1252 = vld [vmem:[#allocation7 + $0xf68] sm:$0xff]
    %v1253 = vld [vmem:[#allocation7 + $0xf70] sm:$0xff]
    %v1254 = vld [vmem:[#allocation7 + $0xf78] sm:$0xff]
    %v1255 = vld [vmem:[#allocation7 + $0xf80] sm:$0xff]
    %v1256 = vld [vmem:[#allocation7 + $0xf88] sm:$0xff]
    %v1257 = vld [vmem:[#allocation7 + $0xf90] sm:$0xff]
    %v1258 = vld [vmem:[#allocation7 + $0xf98] sm:$0xff]
    %v1259 = vld [vmem:[#allocation7 + $0xfa0] sm:$0xff]
    %v1260 = vld [vmem:[#allocation7 + $0xfa8] sm:$0xff]
    %v1261 = vld [vmem:[#allocation7 + $0xfb0] sm:$0xff]
    %v1262 = vld [vmem:[#allocation7 + $0xfb8] sm:$0xff]
    %v1263 = vld [vmem:[#allocation7 + $0xfc0] sm:$0xff]
    %v1264 = vld [vmem:[#allocation7 + $0xfc8] sm:$0xff]
    %v1265 = vld [vmem:[#allocation7 + $0xfd0] sm:$0xff]
    %v1266 = vld [vmem:[#allocation7 + $0xfd8] sm:$0xff]
    %v1267 = vld [vmem:[#allocation7 + $0xfe0] sm:$0xff]
    %v1268 = vld [vmem:[#allocation7 + $0xfe8] sm:$0xff]
    %v1269 = vld [vmem:[#allocation7 + $0xff0] sm:$0xff]
    %v1270 = vld [vmem:[#allocation7 + $0xff8] sm:$0xff]
    %v1271 = vld [vmem:[#allocation8] sm:$0xf]
    %v1273 = vperm.slane %v1271, 0
    %v1274 = vperm.slane %v1271, 1
    %v1275 = vperm.slane %v1271, 2
    %v1276 = vperm.slane %v1271, 3
    %1281 = vmatpush.msra.mxu0 %v819
    %1282 = vmatpush.msra.mxu0 %v815
    %1283 = vmatpush.msra.mxu0 %v811
    %1284 = vmatpush.msra.mxu0 %v807
    %1285 = vmatpush.msra.mxu0 %v803
    %1286 = vmatpush.msra.mxu0 %v799
    %1287 = vmatpush.msra.mxu0 %v795
    %1288 = vmatpush.msra.mxu0 %v791
    %1289 = vmatpush.msra.mxu0 %v787
    %1290 = vmatpush.msra.mxu0 %v783
    %1291 = vmatpush.msra.mxu0 %v779
    %1292 = vmatpush.msra.mxu0 %v775
    %1293 = vmatpush.msra.mxu0 %v771
    %1294 = vmatpush.msra.mxu0 %v767
    %1295 = vmatpush.msra.mxu0 %v763
    %1296 = vmatpush.msra.mxu0 %v759
    %1297 = vmatmul.f32.gmra.mxu0 %v751
    %v1298 = vpop.f32.mrf.mxu0
    %v1299 = vadd.f32 %v1273, %v1298
    %1300 = vdwg.mxu0
    %1301 = vmatpush.msra.mxu0 %v883
    %1302 = vmatpush.msra.mxu0 %v879
    %1303 = vmatpush.msra.mxu0 %v875
    %1304 = vmatpush.msra.mxu0 %v871
    %1305 = vmatpush.msra.mxu0 %v867
    %1306 = vmatpush.msra.mxu0 %v863
    %1307 = vmatpush.msra.mxu0 %v859
    %1308 = vmatpush.msra.mxu0 %v855
    %1309 = vmatpush.msra.mxu0 %v851
    %1310 = vmatpush.msra.mxu0 %v847
    %1311 = vmatpush.msra.mxu0 %v843
    %1312 = vmatpush.msra.mxu0 %v839
    %1313 = vmatpush.msra.mxu0 %v835
    %1314 = vmatpush.msra.mxu0 %v831
    %1315 = vmatpush.msra.mxu0 %v827
    %1316 = vmatpush.msra.mxu0 %v823
    %1317 = vmatmul.f32.gmra.mxu0 %v752
    %v1318 = vpop.f32.mrf.mxu0
    %v1319 = vadd.f32 %v1299, %v1318
    %1320 = vdwg.mxu0
    %1321 = vmatpush.msra.mxu0 %v947
    %1322 = vmatpush.msra.mxu0 %v943
    %1323 = vmatpush.msra.mxu0 %v939
    %1324 = vmatpush.msra.mxu0 %v935
    %1325 = vmatpush.msra.mxu0 %v931
    %1326 = vmatpush.msra.mxu0 %v927
    %1327 = vmatpush.msra.mxu0 %v923
    %1328 = vmatpush.msra.mxu0 %v919
    %1329 = vmatpush.msra.mxu0 %v915
    %1330 = vmatpush.msra.mxu0 %v911
    %1331 = vmatpush.msra.mxu0 %v907
    %1332 = vmatpush.msra.mxu0 %v903
    %1333 = vmatpush.msra.mxu0 %v899
    %1334 = vmatpush.msra.mxu0 %v895
    %1335 = vmatpush.msra.mxu0 %v891
    %1336 = vmatpush.msra.mxu0 %v887
    %1337 = vmatmul.f32.gmra.mxu0 %v753
    %v1338 = vpop.f32.mrf.mxu0
    %v1339 = vadd.f32 %v1319, %v1338
    %1340 = vdwg.mxu0
    %1341 = vmatpush.msra.mxu0 %v1011
    %1342 = vmatpush.msra.mxu0 %v1007
    %1343 = vmatpush.msra.mxu0 %v1003
    %1344 = vmatpush.msra.mxu0 %v999
    %1345 = vmatpush.msra.mxu0 %v995
    %1346 = vmatpush.msra.mxu0 %v991
    %1347 = vmatpush.msra.mxu0 %v987
    %1348 = vmatpush.msra.mxu0 %v983
    %1349 = vmatpush.msra.mxu0 %v979
    %1350 = vmatpush.msra.mxu0 %v975
    %1351 = vmatpush.msra.mxu0 %v971
    %1352 = vmatpush.msra.mxu0 %v967
    %1353 = vmatpush.msra.mxu0 %v963
    %1354 = vmatpush.msra.mxu0 %v959
    %1355 = vmatpush.msra.mxu0 %v955
    %1356 = vmatpush.msra.mxu0 %v951
    %1357 = vmatmul.f32.gmra.mxu0 %v754
    %v1358 = vpop.f32.mrf.mxu0
    %v1359 = vadd.f32 %v1339, %v1358
    %1360 = vdwg.mxu0
    %1361 = vmatpush.msra.mxu0 %v1075
    %1362 = vmatpush.msra.mxu0 %v1071
    %1363 = vmatpush.msra.mxu0 %v1067
    %1364 = vmatpush.msra.mxu0 %v1063
    %1365 = vmatpush.msra.mxu0 %v1059
    %1366 = vmatpush.msra.mxu0 %v1055
    %1367 = vmatpush.msra.mxu0 %v1051
    %1368 = vmatpush.msra.mxu0 %v1047
    %1369 = vmatpush.msra.mxu0 %v1043
    %1370 = vmatpush.msra.mxu0 %v1039
    %1371 = vmatpush.msra.mxu0 %v1035
    %1372 = vmatpush.msra.mxu0 %v1031
    %1373 = vmatpush.msra.mxu0 %v1027
    %1374 = vmatpush.msra.mxu0 %v1023
    %1375 = vmatpush.msra.mxu0 %v1019
    %1376 = vmatpush.msra.mxu0 %v1015
    %1377 = vmatmul.f32.gmra.mxu0 %v755
    %v1378 = vpop.f32.mrf.mxu0
    %v1379 = vadd.f32 %v1359, %v1378
    %1380 = vdwg.mxu0
    %1381 = vmatpush.msra.mxu0 %v1139
    %1382 = vmatpush.msra.mxu0 %v1135
    %1383 = vmatpush.msra.mxu0 %v1131
    %1384 = vmatpush.msra.mxu0 %v1127
    %1385 = vmatpush.msra.mxu0 %v1123
    %1386 = vmatpush.msra.mxu0 %v1119
    %1387 = vmatpush.msra.mxu0 %v1115
    %1388 = vmatpush.msra.mxu0 %v1111
    %1389 = vmatpush.msra.mxu0 %v1107
    %1390 = vmatpush.msra.mxu0 %v1103
    %1391 = vmatpush.msra.mxu0 %v1099
    %1392 = vmatpush.msra.mxu0 %v1095
    %1393 = vmatpush.msra.mxu0 %v1091
    %1394 = vmatpush.msra.mxu0 %v1087
    %1395 = vmatpush.msra.mxu0 %v1083
    %1396 = vmatpush.msra.mxu0 %v1079
    %1397 = vmatmul.f32.gmra.mxu0 %v756
    %v1398 = vpop.f32.mrf.mxu0
    %v1399 = vadd.f32 %v1379, %v1398
    %1400 = vdwg.mxu0
    %1401 = vmatpush.msra.mxu0 %v1203
    %1402 = vmatpush.msra.mxu0 %v1199
    %1403 = vmatpush.msra.mxu0 %v1195
    %1404 = vmatpush.msra.mxu0 %v1191
    %1405 = vmatpush.msra.mxu0 %v1187
    %1406 = vmatpush.msra.mxu0 %v1183
    %1407 = vmatpush.msra.mxu0 %v1179
    %1408 = vmatpush.msra.mxu0 %v1175
    %1409 = vmatpush.msra.mxu0 %v1171
    %1410 = vmatpush.msra.mxu0 %v1167
    %1411 = vmatpush.msra.mxu0 %v1163
    %1412 = vmatpush.msra.mxu0 %v1159
    %1413 = vmatpush.msra.mxu0 %v1155
    %1414 = vmatpush.msra.mxu0 %v1151
    %1415 = vmatpush.msra.mxu0 %v1147
    %1416 = vmatpush.msra.mxu0 %v1143
    %1417 = vmatmul.f32.gmra.mxu0 %v757
    %v1418 = vpop.f32.mrf.mxu0
    %v1419 = vadd.f32 %v1399, %v1418
    %1420 = vdwg.mxu0
    %1421 = vmatpush.msra.mxu0 %v1267
    %1422 = vmatpush.msra.mxu0 %v1263
    %1423 = vmatpush.msra.mxu0 %v1259
    %1424 = vmatpush.msra.mxu0 %v1255
    %1425 = vmatpush.msra.mxu0 %v1251
    %1426 = vmatpush.msra.mxu0 %v1247
    %1427 = vmatpush.msra.mxu0 %v1243
    %1428 = vmatpush.msra.mxu0 %v1239
    %1429 = vmatpush.msra.mxu0 %v1235
    %1430 = vmatpush.msra.mxu0 %v1231
    %1431 = vmatpush.msra.mxu0 %v1227
    %1432 = vmatpush.msra.mxu0 %v1223
    %1433 = vmatpush.msra.mxu0 %v1219
    %1434 = vmatpush.msra.mxu0 %v1215
    %1435 = vmatpush.msra.mxu0 %v1211
    %1436 = vmatpush.msra.mxu0 %v1207
    %1437 = vmatmul.f32.gmra.mxu0 %v758
    %v1438 = vpop.f32.mrf.mxu0
    %v1439 = vadd.f32 %v1419, %v1438
    %1440 = vdwg.mxu0
    %1441 = vmatpush.msra.mxu0 %v820
    %1442 = vmatpush.msra.mxu0 %v816
    %1443 = vmatpush.msra.mxu0 %v812
    %1444 = vmatpush.msra.mxu0 %v808
    %1445 = vmatpush.msra.mxu0 %v804
    %1446 = vmatpush.msra.mxu0 %v800
    %1447 = vmatpush.msra.mxu0 %v796
    %1448 = vmatpush.msra.mxu0 %v792
    %1449 = vmatpush.msra.mxu0 %v788
    %1450 = vmatpush.msra.mxu0 %v784
    %1451 = vmatpush.msra.mxu0 %v780
    %1452 = vmatpush.msra.mxu0 %v776
    %1453 = vmatpush.msra.mxu0 %v772
    %1454 = vmatpush.msra.mxu0 %v768
    %1455 = vmatpush.msra.mxu0 %v764
    %1456 = vmatpush.msra.mxu0 %v760
    %1457 = vmatmul.f32.gmra.mxu0 %v751
    %v1458 = vpop.f32.mrf.mxu0
    %v1459 = vadd.f32 %v1274, %v1458
    %1460 = vdwg.mxu0
    %1461 = vmatpush.msra.mxu0 %v884
    %1462 = vmatpush.msra.mxu0 %v880
    %1463 = vmatpush.msra.mxu0 %v876
    %1464 = vmatpush.msra.mxu0 %v872
    %1465 = vmatpush.msra.mxu0 %v868
    %1466 = vmatpush.msra.mxu0 %v864
    %1467 = vmatpush.msra.mxu0 %v860
    %1468 = vmatpush.msra.mxu0 %v856
    %1469 = vmatpush.msra.mxu0 %v852
    %1470 = vmatpush.msra.mxu0 %v848
    %1471 = vmatpush.msra.mxu0 %v844
    %1472 = vmatpush.msra.mxu0 %v840
    %1473 = vmatpush.msra.mxu0 %v836
    %1474 = vmatpush.msra.mxu0 %v832
    %1475 = vmatpush.msra.mxu0 %v828
    %1476 = vmatpush.msra.mxu0 %v824
    %1477 = vmatmul.f32.gmra.mxu0 %v752
    %v1478 = vpop.f32.mrf.mxu0
    %v1479 = vadd.f32 %v1459, %v1478
    %1480 = vdwg.mxu0
    %1481 = vmatpush.msra.mxu0 %v948
    %1482 = vmatpush.msra.mxu0 %v944
    %1483 = vmatpush.msra.mxu0 %v940
    %1484 = vmatpush.msra.mxu0 %v936
    %1485 = vmatpush.msra.mxu0 %v932
    %1486 = vmatpush.msra.mxu0 %v928
    %1487 = vmatpush.msra.mxu0 %v924
    %1488 = vmatpush.msra.mxu0 %v920
    %1489 = vmatpush.msra.mxu0 %v916
    %1490 = vmatpush.msra.mxu0 %v912
    %1491 = vmatpush.msra.mxu0 %v908
    %1492 = vmatpush.msra.mxu0 %v904
    %1493 = vmatpush.msra.mxu0 %v900
    %1494 = vmatpush.msra.mxu0 %v896
    %1495 = vmatpush.msra.mxu0 %v892
    %1496 = vmatpush.msra.mxu0 %v888
    %1497 = vmatmul.f32.gmra.mxu0 %v753
    %v1498 = vpop.f32.mrf.mxu0
    %v1499 = vadd.f32 %v1479, %v1498
    %1500 = vdwg.mxu0
    %1501 = vmatpush.msra.mxu0 %v1012
    %1502 = vmatpush.msra.mxu0 %v1008
    %1503 = vmatpush.msra.mxu0 %v1004
    %1504 = vmatpush.msra.mxu0 %v1000
    %1505 = vmatpush.msra.mxu0 %v996
    %1506 = vmatpush.msra.mxu0 %v992
    %1507 = vmatpush.msra.mxu0 %v988
    %1508 = vmatpush.msra.mxu0 %v984
    %1509 = vmatpush.msra.mxu0 %v980
    %1510 = vmatpush.msra.mxu0 %v976
    %1511 = vmatpush.msra.mxu0 %v972
    %1512 = vmatpush.msra.mxu0 %v968
    %1513 = vmatpush.msra.mxu0 %v964
    %1514 = vmatpush.msra.mxu0 %v960
    %1515 = vmatpush.msra.mxu0 %v956
    %1516 = vmatpush.msra.mxu0 %v952
    %1517 = vmatmul.f32.gmra.mxu0 %v754
    %v1518 = vpop.f32.mrf.mxu0
    %v1519 = vadd.f32 %v1499, %v1518
    %1520 = vdwg.mxu0
    %1521 = vmatpush.msra.mxu0 %v1076
    %1522 = vmatpush.msra.mxu0 %v1072
    %1523 = vmatpush.msra.mxu0 %v1068
    %1524 = vmatpush.msra.mxu0 %v1064
    %1525 = vmatpush.msra.mxu0 %v1060
    %1526 = vmatpush.msra.mxu0 %v1056
    %1527 = vmatpush.msra.mxu0 %v1052
    %1528 = vmatpush.msra.mxu0 %v1048
    %1529 = vmatpush.msra.mxu0 %v1044
    %1530 = vmatpush.msra.mxu0 %v1040
    %1531 = vmatpush.msra.mxu0 %v1036
    %1532 = vmatpush.msra.mxu0 %v1032
    %1533 = vmatpush.msra.mxu0 %v1028
    %1534 = vmatpush.msra.mxu0 %v1024
    %1535 = vmatpush.msra.mxu0 %v1020
    %1536 = vmatpush.msra.mxu0 %v1016
    %1537 = vmatmul.f32.gmra.mxu0 %v755
    %v1538 = vpop.f32.mrf.mxu0
    %v1539 = vadd.f32 %v1519, %v1538
    %1540 = vdwg.mxu0
    %1541 = vmatpush.msra.mxu0 %v1140
    %1542 = vmatpush.msra.mxu0 %v1136
    %1543 = vmatpush.msra.mxu0 %v1132
    %1544 = vmatpush.msra.mxu0 %v1128
    %1545 = vmatpush.msra.mxu0 %v1124
    %1546 = vmatpush.msra.mxu0 %v1120
    %1547 = vmatpush.msra.mxu0 %v1116
    %1548 = vmatpush.msra.mxu0 %v1112
    %1549 = vmatpush.msra.mxu0 %v1108
    %1550 = vmatpush.msra.mxu0 %v1104
    %1551 = vmatpush.msra.mxu0 %v1100
    %1552 = vmatpush.msra.mxu0 %v1096
    %1553 = vmatpush.msra.mxu0 %v1092
    %1554 = vmatpush.msra.mxu0 %v1088
    %1555 = vmatpush.msra.mxu0 %v1084
    %1556 = vmatpush.msra.mxu0 %v1080
    %1557 = vmatmul.f32.gmra.mxu0 %v756
    %v1558 = vpop.f32.mrf.mxu0
    %v1559 = vadd.f32 %v1539, %v1558
    %1560 = vdwg.mxu0
    %1561 = vmatpush.msra.mxu0 %v1204
    %1562 = vmatpush.msra.mxu0 %v1200
    %1563 = vmatpush.msra.mxu0 %v1196
    %1564 = vmatpush.msra.mxu0 %v1192
    %1565 = vmatpush.msra.mxu0 %v1188
    %1566 = vmatpush.msra.mxu0 %v1184
    %1567 = vmatpush.msra.mxu0 %v1180
    %1568 = vmatpush.msra.mxu0 %v1176
    %1569 = vmatpush.msra.mxu0 %v1172
    %1570 = vmatpush.msra.mxu0 %v1168
    %1571 = vmatpush.msra.mxu0 %v1164
    %1572 = vmatpush.msra.mxu0 %v1160
    %1573 = vmatpush.msra.mxu0 %v1156
    %1574 = vmatpush.msra.mxu0 %v1152
    %1575 = vmatpush.msra.mxu0 %v1148
    %1576 = vmatpush.msra.mxu0 %v1144
    %1577 = vmatmul.f32.gmra.mxu0 %v757
    %v1578 = vpop.f32.mrf.mxu0
    %v1579 = vadd.f32 %v1559, %v1578
    %1580 = vdwg.mxu0
    %1581 = vmatpush.msra.mxu0 %v1268
    %1582 = vmatpush.msra.mxu0 %v1264
    %1583 = vmatpush.msra.mxu0 %v1260
    %1584 = vmatpush.msra.mxu0 %v1256
    %1585 = vmatpush.msra.mxu0 %v1252
    %1586 = vmatpush.msra.mxu0 %v1248
    %1587 = vmatpush.msra.mxu0 %v1244
    %1588 = vmatpush.msra.mxu0 %v1240
    %1589 = vmatpush.msra.mxu0 %v1236
    %1590 = vmatpush.msra.mxu0 %v1232
    %1591 = vmatpush.msra.mxu0 %v1228
    %1592 = vmatpush.msra.mxu0 %v1224
    %1593 = vmatpush.msra.mxu0 %v1220
    %1594 = vmatpush.msra.mxu0 %v1216
    %1595 = vmatpush.msra.mxu0 %v1212
    %1596 = vmatpush.msra.mxu0 %v1208
    %1597 = vmatmul.f32.gmra.mxu0 %v758
    %v1598 = vpop.f32.mrf.mxu0
    %v1599 = vadd.f32 %v1579, %v1598
    %1600 = vdwg.mxu0
    %1601 = vmatpush.msra.mxu0 %v821
    %1602 = vmatpush.msra.mxu0 %v817
    %1603 = vmatpush.msra.mxu0 %v813
    %1604 = vmatpush.msra.mxu0 %v809
    %1605 = vmatpush.msra.mxu0 %v805
    %1606 = vmatpush.msra.mxu0 %v801
    %1607 = vmatpush.msra.mxu0 %v797
    %1608 = vmatpush.msra.mxu0 %v793
    %1609 = vmatpush.msra.mxu0 %v789
    %1610 = vmatpush.msra.mxu0 %v785
    %1611 = vmatpush.msra.mxu0 %v781
    %1612 = vmatpush.msra.mxu0 %v777
    %1613 = vmatpush.msra.mxu0 %v773
    %1614 = vmatpush.msra.mxu0 %v769
    %1615 = vmatpush.msra.mxu0 %v765
    %1616 = vmatpush.msra.mxu0 %v761
    %1617 = vmatmul.f32.gmra.mxu0 %v751
    %v1618 = vpop.f32.mrf.mxu0
    %v1619 = vadd.f32 %v1275, %v1618
    %1620 = vdwg.mxu0
    %1621 = vmatpush.msra.mxu0 %v885
    %1622 = vmatpush.msra.mxu0 %v881
    %1623 = vmatpush.msra.mxu0 %v877
    %1624 = vmatpush.msra.mxu0 %v873
    %1625 = vmatpush.msra.mxu0 %v869
    %1626 = vmatpush.msra.mxu0 %v865
    %1627 = vmatpush.msra.mxu0 %v861
    %1628 = vmatpush.msra.mxu0 %v857
    %1629 = vmatpush.msra.mxu0 %v853
    %1630 = vmatpush.msra.mxu0 %v849
    %1631 = vmatpush.msra.mxu0 %v845
    %1632 = vmatpush.msra.mxu0 %v841
    %1633 = vmatpush.msra.mxu0 %v837
    %1634 = vmatpush.msra.mxu0 %v833
    %1635 = vmatpush.msra.mxu0 %v829
    %1636 = vmatpush.msra.mxu0 %v825
    %1637 = vmatmul.f32.gmra.mxu0 %v752
    %v1638 = vpop.f32.mrf.mxu0
    %v1639 = vadd.f32 %v1619, %v1638
    %1640 = vdwg.mxu0
    %1641 = vmatpush.msra.mxu0 %v949
    %1642 = vmatpush.msra.mxu0 %v945
    %1643 = vmatpush.msra.mxu0 %v941
    %1644 = vmatpush.msra.mxu0 %v937
    %1645 = vmatpush.msra.mxu0 %v933
    %1646 = vmatpush.msra.mxu0 %v929
    %1647 = vmatpush.msra.mxu0 %v925
    %1648 = vmatpush.msra.mxu0 %v921
    %1649 = vmatpush.msra.mxu0 %v917
    %1650 = vmatpush.msra.mxu0 %v913
    %1651 = vmatpush.msra.mxu0 %v909
    %1652 = vmatpush.msra.mxu0 %v905
    %1653 = vmatpush.msra.mxu0 %v901
    %1654 = vmatpush.msra.mxu0 %v897
    %1655 = vmatpush.msra.mxu0 %v893
    %1656 = vmatpush.msra.mxu0 %v889
    %1657 = vmatmul.f32.gmra.mxu0 %v753
    %v1658 = vpop.f32.mrf.mxu0
    %v1659 = vadd.f32 %v1639, %v1658
    %1660 = vdwg.mxu0
    %1661 = vmatpush.msra.mxu0 %v1013
    %1662 = vmatpush.msra.mxu0 %v1009
    %1663 = vmatpush.msra.mxu0 %v1005
    %1664 = vmatpush.msra.mxu0 %v1001
    %1665 = vmatpush.msra.mxu0 %v997
    %1666 = vmatpush.msra.mxu0 %v993
    %1667 = vmatpush.msra.mxu0 %v989
    %1668 = vmatpush.msra.mxu0 %v985
    %1669 = vmatpush.msra.mxu0 %v981
    %1670 = vmatpush.msra.mxu0 %v977
    %1671 = vmatpush.msra.mxu0 %v973
    %1672 = vmatpush.msra.mxu0 %v969
    %1673 = vmatpush.msra.mxu0 %v965
    %1674 = vmatpush.msra.mxu0 %v961
    %1675 = vmatpush.msra.mxu0 %v957
    %1676 = vmatpush.msra.mxu0 %v953
    %1677 = vmatmul.f32.gmra.mxu0 %v754
    %v1678 = vpop.f32.mrf.mxu0
    %v1679 = vadd.f32 %v1659, %v1678
    %1680 = vdwg.mxu0
    %1681 = vmatpush.msra.mxu0 %v1077
    %1682 = vmatpush.msra.mxu0 %v1073
    %1683 = vmatpush.msra.mxu0 %v1069
    %1684 = vmatpush.msra.mxu0 %v1065
    %1685 = vmatpush.msra.mxu0 %v1061
    %1686 = vmatpush.msra.mxu0 %v1057
    %1687 = vmatpush.msra.mxu0 %v1053
    %1688 = vmatpush.msra.mxu0 %v1049
    %1689 = vmatpush.msra.mxu0 %v1045
    %1690 = vmatpush.msra.mxu0 %v1041
    %1691 = vmatpush.msra.mxu0 %v1037
    %1692 = vmatpush.msra.mxu0 %v1033
    %1693 = vmatpush.msra.mxu0 %v1029
    %1694 = vmatpush.msra.mxu0 %v1025
    %1695 = vmatpush.msra.mxu0 %v1021
    %1696 = vmatpush.msra.mxu0 %v1017
    %1697 = vmatmul.f32.gmra.mxu0 %v755
    %v1698 = vpop.f32.mrf.mxu0
    %v1699 = vadd.f32 %v1679, %v1698
    %1700 = vdwg.mxu0
    %1701 = vmatpush.msra.mxu0 %v1141
    %1702 = vmatpush.msra.mxu0 %v1137
    %1703 = vmatpush.msra.mxu0 %v1133
    %1704 = vmatpush.msra.mxu0 %v1129
    %1705 = vmatpush.msra.mxu0 %v1125
    %1706 = vmatpush.msra.mxu0 %v1121
    %1707 = vmatpush.msra.mxu0 %v1117
    %1708 = vmatpush.msra.mxu0 %v1113
    %1709 = vmatpush.msra.mxu0 %v1109
    %1710 = vmatpush.msra.mxu0 %v1105
    %1711 = vmatpush.msra.mxu0 %v1101
    %1712 = vmatpush.msra.mxu0 %v1097
    %1713 = vmatpush.msra.mxu0 %v1093
    %1714 = vmatpush.msra.mxu0 %v1089
    %1715 = vmatpush.msra.mxu0 %v1085
    %1716 = vmatpush.msra.mxu0 %v1081
    %1717 = vmatmul.f32.gmra.mxu0 %v756
    %v1718 = vpop.f32.mrf.mxu0
    %v1719 = vadd.f32 %v1699, %v1718
    %1720 = vdwg.mxu0
    %1721 = vmatpush.msra.mxu0 %v1205
    %1722 = vmatpush.msra.mxu0 %v1201
    %1723 = vmatpush.msra.mxu0 %v1197
    %1724 = vmatpush.msra.mxu0 %v1193
    %1725 = vmatpush.msra.mxu0 %v1189
    %1726 = vmatpush.msra.mxu0 %v1185
    %1727 = vmatpush.msra.mxu0 %v1181
    %1728 = vmatpush.msra.mxu0 %v1177
    %1729 = vmatpush.msra.mxu0 %v1173
    %1730 = vmatpush.msra.mxu0 %v1169
    %1731 = vmatpush.msra.mxu0 %v1165
    %1732 = vmatpush.msra.mxu0 %v1161
    %1733 = vmatpush.msra.mxu0 %v1157
    %1734 = vmatpush.msra.mxu0 %v1153
    %1735 = vmatpush.msra.mxu0 %v1149
    %1736 = vmatpush.msra.mxu0 %v1145
    %1737 = vmatmul.f32.gmra.mxu0 %v757
    %v1738 = vpop.f32.mrf.mxu0
    %v1739 = vadd.f32 %v1719, %v1738
    %1740 = vdwg.mxu0
    %1741 = vmatpush.msra.mxu0 %v1269
    %1742 = vmatpush.msra.mxu0 %v1265
    %1743 = vmatpush.msra.mxu0 %v1261
    %1744 = vmatpush.msra.mxu0 %v1257
    %1745 = vmatpush.msra.mxu0 %v1253
    %1746 = vmatpush.msra.mxu0 %v1249
    %1747 = vmatpush.msra.mxu0 %v1245
    %1748 = vmatpush.msra.mxu0 %v1241
    %1749 = vmatpush.msra.mxu0 %v1237
    %1750 = vmatpush.msra.mxu0 %v1233
    %1751 = vmatpush.msra.mxu0 %v1229
    %1752 = vmatpush.msra.mxu0 %v1225
    %1753 = vmatpush.msra.mxu0 %v1221
    %1754 = vmatpush.msra.mxu0 %v1217
    %1755 = vmatpush.msra.mxu0 %v1213
    %1756 = vmatpush.msra.mxu0 %v1209
    %1757 = vmatmul.f32.gmra.mxu0 %v758
    %v1758 = vpop.f32.mrf.mxu0
    %v1759 = vadd.f32 %v1739, %v1758
    %1760 = vdwg.mxu0
    %1761 = vmatpush.msra.mxu0 %v822
    %1762 = vmatpush.msra.mxu0 %v818
    %1763 = vmatpush.msra.mxu0 %v814
    %1764 = vmatpush.msra.mxu0 %v810
    %1765 = vmatpush.msra.mxu0 %v806
    %1766 = vmatpush.msra.mxu0 %v802
    %1767 = vmatpush.msra.mxu0 %v798
    %1768 = vmatpush.msra.mxu0 %v794
    %1769 = vmatpush.msra.mxu0 %v790
    %1770 = vmatpush.msra.mxu0 %v786
    %1771 = vmatpush.msra.mxu0 %v782
    %1772 = vmatpush.msra.mxu0 %v778
    %1773 = vmatpush.msra.mxu0 %v774
    %1774 = vmatpush.msra.mxu0 %v770
    %1775 = vmatpush.msra.mxu0 %v766
    %1776 = vmatpush.msra.mxu0 %v762
    %1777 = vmatmul.f32.gmra.mxu0 %v751
    %v1778 = vpop.f32.mrf.mxu0
    %v1779 = vadd.f32 %v1276, %v1778
    %1780 = vdwg.mxu0
    %1781 = vmatpush.msra.mxu0 %v886
    %1782 = vmatpush.msra.mxu0 %v882
    %1783 = vmatpush.msra.mxu0 %v878
    %1784 = vmatpush.msra.mxu0 %v874
    %1785 = vmatpush.msra.mxu0 %v870
    %1786 = vmatpush.msra.mxu0 %v866
    %1787 = vmatpush.msra.mxu0 %v862
    %1788 = vmatpush.msra.mxu0 %v858
    %1789 = vmatpush.msra.mxu0 %v854
    %1790 = vmatpush.msra.mxu0 %v850
    %1791 = vmatpush.msra.mxu0 %v846
    %1792 = vmatpush.msra.mxu0 %v842
    %1793 = vmatpush.msra.mxu0 %v838
    %1794 = vmatpush.msra.mxu0 %v834
    %1795 = vmatpush.msra.mxu0 %v830
    %1796 = vmatpush.msra.mxu0 %v826
    %1797 = vmatmul.f32.gmra.mxu0 %v752
    %v1798 = vpop.f32.mrf.mxu0
    %v1799 = vadd.f32 %v1779, %v1798
    %1800 = vdwg.mxu0
    %1801 = vmatpush.msra.mxu0 %v950
    %1802 = vmatpush.msra.mxu0 %v946
    %1803 = vmatpush.msra.mxu0 %v942
    %1804 = vmatpush.msra.mxu0 %v938
    %1805 = vmatpush.msra.mxu0 %v934
    %1806 = vmatpush.msra.mxu0 %v930
    %1807 = vmatpush.msra.mxu0 %v926
    %1808 = vmatpush.msra.mxu0 %v922
    %1809 = vmatpush.msra.mxu0 %v918
    %1810 = vmatpush.msra.mxu0 %v914
    %1811 = vmatpush.msra.mxu0 %v910
    %1812 = vmatpush.msra.mxu0 %v906
    %1813 = vmatpush.msra.mxu0 %v902
    %1814 = vmatpush.msra.mxu0 %v898
    %1815 = vmatpush.msra.mxu0 %v894
    %1816 = vmatpush.msra.mxu0 %v890
    %1817 = vmatmul.f32.gmra.mxu0 %v753
    %v1818 = vpop.f32.mrf.mxu0
    %v1819 = vadd.f32 %v1799, %v1818
    %1820 = vdwg.mxu0
    %1821 = vmatpush.msra.mxu0 %v1014
    %1822 = vmatpush.msra.mxu0 %v1010
    %1823 = vmatpush.msra.mxu0 %v1006
    %1824 = vmatpush.msra.mxu0 %v1002
    %1825 = vmatpush.msra.mxu0 %v998
    %1826 = vmatpush.msra.mxu0 %v994
    %1827 = vmatpush.msra.mxu0 %v990
    %1828 = vmatpush.msra.mxu0 %v986
    %1829 = vmatpush.msra.mxu0 %v982
    %1830 = vmatpush.msra.mxu0 %v978
    %1831 = vmatpush.msra.mxu0 %v974
    %1832 = vmatpush.msra.mxu0 %v970
    %1833 = vmatpush.msra.mxu0 %v966
    %1834 = vmatpush.msra.mxu0 %v962
    %1835 = vmatpush.msra.mxu0 %v958
    %1836 = vmatpush.msra.mxu0 %v954
    %1837 = vmatmul.f32.gmra.mxu0 %v754
    %v1838 = vpop.f32.mrf.mxu0
    %v1839 = vadd.f32 %v1819, %v1838
    %1840 = vdwg.mxu0
    %1841 = vmatpush.msra.mxu0 %v1078
    %1842 = vmatpush.msra.mxu0 %v1074
    %1843 = vmatpush.msra.mxu0 %v1070
    %1844 = vmatpush.msra.mxu0 %v1066
    %1845 = vmatpush.msra.mxu0 %v1062
    %1846 = vmatpush.msra.mxu0 %v1058
    %1847 = vmatpush.msra.mxu0 %v1054
    %1848 = vmatpush.msra.mxu0 %v1050
    %1849 = vmatpush.msra.mxu0 %v1046
    %1850 = vmatpush.msra.mxu0 %v1042
    %1851 = vmatpush.msra.mxu0 %v1038
    %1852 = vmatpush.msra.mxu0 %v1034
    %1853 = vmatpush.msra.mxu0 %v1030
    %1854 = vmatpush.msra.mxu0 %v1026
    %1855 = vmatpush.msra.mxu0 %v1022
    %1856 = vmatpush.msra.mxu0 %v1018
    %1857 = vmatmul.f32.gmra.mxu0 %v755
    %v1858 = vpop.f32.mrf.mxu0
    %v1859 = vadd.f32 %v1839, %v1858
    %1860 = vdwg.mxu0
    %1861 = vmatpush.msra.mxu0 %v1142
    %1862 = vmatpush.msra.mxu0 %v1138
    %1863 = vmatpush.msra.mxu0 %v1134
    %1864 = vmatpush.msra.mxu0 %v1130
    %1865 = vmatpush.msra.mxu0 %v1126
    %1866 = vmatpush.msra.mxu0 %v1122
    %1867 = vmatpush.msra.mxu0 %v1118
    %1868 = vmatpush.msra.mxu0 %v1114
    %1869 = vmatpush.msra.mxu0 %v1110
    %1870 = vmatpush.msra.mxu0 %v1106
    %1871 = vmatpush.msra.mxu0 %v1102
    %1872 = vmatpush.msra.mxu0 %v1098
    %1873 = vmatpush.msra.mxu0 %v1094
    %1874 = vmatpush.msra.mxu0 %v1090
    %1875 = vmatpush.msra.mxu0 %v1086
    %1876 = vmatpush.msra.mxu0 %v1082
    %1877 = vmatmul.f32.gmra.mxu0 %v756
    %v1878 = vpop.f32.mrf.mxu0
    %v1879 = vadd.f32 %v1859, %v1878
    %1880 = vdwg.mxu0
    %1881 = vmatpush.msra.mxu0 %v1206
    %1882 = vmatpush.msra.mxu0 %v1202
    %1883 = vmatpush.msra.mxu0 %v1198
    %1884 = vmatpush.msra.mxu0 %v1194
    %1885 = vmatpush.msra.mxu0 %v1190
    %1886 = vmatpush.msra.mxu0 %v1186
    %1887 = vmatpush.msra.mxu0 %v1182
    %1888 = vmatpush.msra.mxu0 %v1178
    %1889 = vmatpush.msra.mxu0 %v1174
    %1890 = vmatpush.msra.mxu0 %v1170
    %1891 = vmatpush.msra.mxu0 %v1166
    %1892 = vmatpush.msra.mxu0 %v1162
    %1893 = vmatpush.msra.mxu0 %v1158
    %1894 = vmatpush.msra.mxu0 %v1154
    %1895 = vmatpush.msra.mxu0 %v1150
    %1896 = vmatpush.msra.mxu0 %v1146
    %1897 = vmatmul.f32.gmra.mxu0 %v757
    %v1898 = vpop.f32.mrf.mxu0
    %v1899 = vadd.f32 %v1879, %v1898
    %1900 = vdwg.mxu0
    %1901 = vmatpush.msra.mxu0 %v1270
    %1902 = vmatpush.msra.mxu0 %v1266
    %1903 = vmatpush.msra.mxu0 %v1262
    %1904 = vmatpush.msra.mxu0 %v1258
    %1905 = vmatpush.msra.mxu0 %v1254
    %1906 = vmatpush.msra.mxu0 %v1250
    %1907 = vmatpush.msra.mxu0 %v1246
    %1908 = vmatpush.msra.mxu0 %v1242
    %1909 = vmatpush.msra.mxu0 %v1238
    %1910 = vmatpush.msra.mxu0 %v1234
    %1911 = vmatpush.msra.mxu0 %v1230
    %1912 = vmatpush.msra.mxu0 %v1226
    %1913 = vmatpush.msra.mxu0 %v1222
    %1914 = vmatpush.msra.mxu0 %v1218
    %1915 = vmatpush.msra.mxu0 %v1214
    %1916 = vmatpush.msra.mxu0 %v1210
    %1917 = vmatmul.f32.gmra.mxu0 %v758
    %v1918 = vpop.f32.mrf.mxu0
    %v1919 = vadd.f32 %v1899, %v1918
    %1920 = vdwg.mxu0
    %v1921 = vmax.f32 %v1439, 0.0
    %v1922 = vmax.f32 %v1599, 0.0
    %v1923 = vmax.f32 %v1759, 0.0
    %v1924 = vmax.f32 %v1919, 0.0
    %v1925 = vld [vmem:[#allocation10] sm:$0xff]
    %v1926 = vld [vmem:[#allocation10 + $0x8] sm:$0xff]
    %v1927 = vld [vmem:[#allocation10 + $0x10] sm:$0xff]
    %v1928 = vld [vmem:[#allocation10 + $0x18] sm:$0xff]
    %v1929 = vld [vmem:[#allocation10 + $0x20] sm:$0xff]
    %v1930 = vld [vmem:[#allocation10 + $0x28] sm:$0xff]
    %v1931 = vld [vmem:[#allocation10 + $0x30] sm:$0xff]
    %v1932 = vld [vmem:[#allocation10 + $0x38] sm:$0xff]
    %v1933 = vld [vmem:[#allocation10 + $0x40] sm:$0xff]
    %v1934 = vld [vmem:[#allocation10 + $0x48] sm:$0xff]
    %v1935 = vld [vmem:[#allocation10 + $0x50] sm:$0xff]
    %v1936 = vld [vmem:[#allocation10 + $0x58] sm:$0xff]
    %v1937 = vld [vmem:[#allocation10 + $0x60] sm:$0xff]
    %v1938 = vld [vmem:[#allocation10 + $0x68] sm:$0xff]
    %v1939 = vld [vmem:[#allocation10 + $0x70] sm:$0xff]
    %v1940 = vld [vmem:[#allocation10 + $0x78] sm:$0xff]
    %v1941 = vld [vmem:[#allocation10 + $0x80] sm:$0xff]
    %v1942 = vld [vmem:[#allocation10 + $0x88] sm:$0xff]
    %v1943 = vld [vmem:[#allocation10 + $0x90] sm:$0xff]
    %v1944 = vld [vmem:[#allocation10 + $0x98] sm:$0xff]
    %v1945 = vld [vmem:[#allocation10 + $0xa0] sm:$0xff]
    %v1946 = vld [vmem:[#allocation10 + $0xa8] sm:$0xff]
    %v1947 = vld [vmem:[#allocation10 + $0xb0] sm:$0xff]
    %v1948 = vld [vmem:[#allocation10 + $0xb8] sm:$0xff]
    %v1949 = vld [vmem:[#allocation10 + $0xc0] sm:$0xff]
    %v1950 = vld [vmem:[#allocation10 + $0xc8] sm:$0xff]
    %v1951 = vld [vmem:[#allocation10 + $0xd0] sm:$0xff]
    %v1952 = vld [vmem:[#allocation10 + $0xd8] sm:$0xff]
    %v1953 = vld [vmem:[#allocation10 + $0xe0] sm:$0xff]
    %v1954 = vld [vmem:[#allocation10 + $0xe8] sm:$0xff]
    %v1955 = vld [vmem:[#allocation10 + $0xf0] sm:$0xff]
    %v1956 = vld [vmem:[#allocation10 + $0xf8] sm:$0xff]
    %v1957 = vld [vmem:[#allocation10 + $0x100] sm:$0xff]
    %v1958 = vld [vmem:[#allocation10 + $0x108] sm:$0xff]
    %v1959 = vld [vmem:[#allocation10 + $0x110] sm:$0xff]
    %v1960 = vld [vmem:[#allocation10 + $0x118] sm:$0xff]
    %v1961 = vld [vmem:[#allocation10 + $0x120] sm:$0xff]
    %v1962 = vld [vmem:[#allocation10 + $0x128] sm:$0xff]
    %v1963 = vld [vmem:[#allocation10 + $0x130] sm:$0xff]
    %v1964 = vld [vmem:[#allocation10 + $0x138] sm:$0xff]
    %v1965 = vld [vmem:[#allocation10 + $0x140] sm:$0xff]
    %v1966 = vld [vmem:[#allocation10 + $0x148] sm:$0xff]
    %v1967 = vld [vmem:[#allocation10 + $0x150] sm:$0xff]
    %v1968 = vld [vmem:[#allocation10 + $0x158] sm:$0xff]
    %v1969 = vld [vmem:[#allocation10 + $0x160] sm:$0xff]
    %v1970 = vld [vmem:[#allocation10 + $0x168] sm:$0xff]
    %v1971 = vld [vmem:[#allocation10 + $0x170] sm:$0xff]
    %v1972 = vld [vmem:[#allocation10 + $0x178] sm:$0xff]
    %v1973 = vld [vmem:[#allocation10 + $0x180] sm:$0xff]
    %v1974 = vld [vmem:[#allocation10 + $0x188] sm:$0xff]
    %v1975 = vld [vmem:[#allocation10 + $0x190] sm:$0xff]
    %v1976 = vld [vmem:[#allocation10 + $0x198] sm:$0xff]
    %v1977 = vld [vmem:[#allocation10 + $0x1a0] sm:$0xff]
    %v1978 = vld [vmem:[#allocation10 + $0x1a8] sm:$0xff]
    %v1979 = vld [vmem:[#allocation10 + $0x1b0] sm:$0xff]
    %v1980 = vld [vmem:[#allocation10 + $0x1b8] sm:$0xff]
    %v1981 = vld [vmem:[#allocation10 + $0x1c0] sm:$0xff]
    %v1982 = vld [vmem:[#allocation10 + $0x1c8] sm:$0xff]
    %v1983 = vld [vmem:[#allocation10 + $0x1d0] sm:$0xff]
    %v1984 = vld [vmem:[#allocation10 + $0x1d8] sm:$0xff]
    %v1985 = vld [vmem:[#allocation10 + $0x1e0] sm:$0xff]
    %v1986 = vld [vmem:[#allocation10 + $0x1e8] sm:$0xff]
    %v1987 = vld [vmem:[#allocation10 + $0x1f0] sm:$0xff]
    %v1988 = vld [vmem:[#allocation10 + $0x1f8] sm:$0xff]
    %v1989 = vld [vmem:[#allocation11] sm:$0x1]
    %v1991 = vperm.slane %v1989, 0
    %1993 = vmatpush.msra.mxu0 %v1940
    %1994 = vmatpush.msra.mxu0 %v1939
    %1995 = vmatpush.msra.mxu0 %v1938
    %1996 = vmatpush.msra.mxu0 %v1937
    %1997 = vmatpush.msra.mxu0 %v1936
    %1998 = vmatpush.msra.mxu0 %v1935
    %1999 = vmatpush.msra.mxu0 %v1934
    %2000 = vmatpush.msra.mxu0 %v1933
    %2001 = vmatpush.msra.mxu0 %v1932
    %2002 = vmatpush.msra.mxu0 %v1931
    %2003 = vmatpush.msra.mxu0 %v1930
    %2004 = vmatpush.msra.mxu0 %v1929
    %2005 = vmatpush.msra.mxu0 %v1928
    %2006 = vmatpush.msra.mxu0 %v1927
    %2007 = vmatpush.msra.mxu0 %v1926
    %2008 = vmatpush.msra.mxu0 %v1925
    %2009 = vmatmul.f32.gmra.mxu0 %v1921
    %v2010 = vpop.f32.mrf.mxu0
    %v2011 = vadd.f32 %v1991, %v2010
    %2012 = vdwg.mxu0
    %2013 = vmatpush.msra.mxu0 %v1956
    %2014 = vmatpush.msra.mxu0 %v1955
    %2015 = vmatpush.msra.mxu0 %v1954
    %2016 = vmatpush.msra.mxu0 %v1953
    %2017 = vmatpush.msra.mxu0 %v1952
    %2018 = vmatpush.msra.mxu0 %v1951
    %2019 = vmatpush.msra.mxu0 %v1950
    %2020 = vmatpush.msra.mxu0 %v1949
    %2021 = vmatpush.msra.mxu0 %v1948
    %2022 = vmatpush.msra.mxu0 %v1947
    %2023 = vmatpush.msra.mxu0 %v1946
    %2024 = vmatpush.msra.mxu0 %v1945
    %2025 = vmatpush.msra.mxu0 %v1944
    %2026 = vmatpush.msra.mxu0 %v1943
    %2027 = vmatpush.msra.mxu0 %v1942
    %2028 = vmatpush.msra.mxu0 %v1941
    %2029 = vmatmul.f32.gmra.mxu0 %v1922
    %v2030 = vpop.f32.mrf.mxu0
    %v2031 = vadd.f32 %v2011, %v2030
    %2032 = vdwg.mxu0
    %2033 = vmatpush.msra.mxu0 %v1972
    %2034 = vmatpush.msra.mxu0 %v1971
    %2035 = vmatpush.msra.mxu0 %v1970
    %2036 = vmatpush.msra.mxu0 %v1969
    %2037 = vmatpush.msra.mxu0 %v1968
    %2038 = vmatpush.msra.mxu0 %v1967
    %2039 = vmatpush.msra.mxu0 %v1966
    %2040 = vmatpush.msra.mxu0 %v1965
    %2041 = vmatpush.msra.mxu0 %v1964
    %2042 = vmatpush.msra.mxu0 %v1963
    %2043 = vmatpush.msra.mxu0 %v1962
    %2044 = vmatpush.msra.mxu0 %v1961
    %2045 = vmatpush.msra.mxu0 %v1960
    %2046 = vmatpush.msra.mxu0 %v1959
    %2047 = vmatpush.msra.mxu0 %v1958
    %2048 = vmatpush.msra.mxu0 %v1957
    %2049 = vmatmul.f32.gmra.mxu0 %v1923
    %v2050 = vpop.f32.mrf.mxu0
    %v2051 = vadd.f32 %v2031, %v2050
    %2052 = vdwg.mxu0
    %2053 = vmatpush.msra.mxu0 %v1988
    %2054 = vmatpush.msra.mxu0 %v1987
    %2055 = vmatpush.msra.mxu0 %v1986
    %2056 = vmatpush.msra.mxu0 %v1985
    %2057 = vmatpush.msra.mxu0 %v1984
    %2058 = vmatpush.msra.mxu0 %v1983
    %2059 = vmatpush.msra.mxu0 %v1982
    %2060 = vmatpush.msra.mxu0 %v1981
    %2061 = vmatpush.msra.mxu0 %v1980
    %2062 = vmatpush.msra.mxu0 %v1979
    %2063 = vmatpush.msra.mxu0 %v1978
    %2064 = vmatpush.msra.mxu0 %v1977
    %2065 = vmatpush.msra.mxu0 %v1976
    %2066 = vmatpush.msra.mxu0 %v1975
    %2067 = vmatpush.msra.mxu0 %v1974
    %2068 = vmatpush.msra.mxu0 %v1973
    %2069 = vmatmul.f32.gmra.mxu0 %v1924
    %v2070 = vpop.f32.mrf.mxu0
    %v2071 = vadd.f32 %v2051, %v2070
    %2072 = vdwg.mxu0
    %v2073 = vmax.f32 %v2071, 0.0
    %v2074 = vld [vmem:[#allocation13] sm:$0xff]
    %v2075 = vld [vmem:[#allocation13 + $0x8] sm:$0xff]
    %v2076 = vld [vmem:[#allocation13 + $0x10] sm:$0xff]
    %v2077 = vld [vmem:[#allocation13 + $0x18] sm:$0xff]
    %v2078 = vld [vmem:[#allocation13 + $0x20] sm:$0xff]
    %v2079 = vld [vmem:[#allocation13 + $0x28] sm:$0xff]
    %v2080 = vld [vmem:[#allocation13 + $0x30] sm:$0xff]
    %v2081 = vld [vmem:[#allocation13 + $0x38] sm:$0xff]
    %v2082 = vld [vmem:[#allocation13 + $0x40] sm:$0xff]
    %v2083 = vld [vmem:[#allocation13 + $0x48] sm:$0xff]
    %v2084 = vld [vmem:[#allocation13 + $0x50] sm:$0xff]
    %v2085 = vld [vmem:[#allocation13 + $0x58] sm:$0xff]
    %v2086 = vld [vmem:[#allocation13 + $0x60] sm:$0xff]
    %v2087 = vld [vmem:[#allocation13 + $0x68] sm:$0xff]
    %v2088 = vld [vmem:[#allocation13 + $0x70] sm:$0xff]
    %v2089 = vld [vmem:[#allocation13 + $0x78] sm:$0xff]
    %v2090 = vld [vmem:[#allocation14] sm:$0x1]
    %v2092 = vperm.slane %v2090, 0
    %2094 = vmatpush.msra.mxu0 %v2089
    %2095 = vmatpush.msra.mxu0 %v2088
    %2096 = vmatpush.msra.mxu0 %v2087
    %2097 = vmatpush.msra.mxu0 %v2086
    %2098 = vmatpush.msra.mxu0 %v2085
    %2099 = vmatpush.msra.mxu0 %v2084
    %2100 = vmatpush.msra.mxu0 %v2083
    %2101 = vmatpush.msra.mxu0 %v2082
    %2102 = vmatpush.msra.mxu0 %v2081
    %2103 = vmatpush.msra.mxu0 %v2080
    %2104 = vmatpush.msra.mxu0 %v2079
    %2105 = vmatpush.msra.mxu0 %v2078
    %2106 = vmatpush.msra.mxu0 %v2077
    %2107 = vmatpush.msra.mxu0 %v2076
    %2108 = vmatpush.msra.mxu0 %v2075
    %2109 = vmatpush.msra.mxu0 %v2074
    %2110 = vmatmul.f32.gmra.mxu0 %v2073
    %v2111 = vpop.f32.mrf.mxu0
    %v2112 = vadd.f32 %v2092, %v2111
    %2113 = vdwg.mxu0
    %2114 = vst [vmem:[#allocation16] sm:$0x3] %v2112
    // Predicated region
    $region70: #{_fused_forward.1} parent=1 // pred_check
      _
    $region71: #{_fused_forward.1} parent=1 // pred_check_branch
      %2116 = sbr.rel (0) target = $region73
    $region72: #{_fused_forward.1} parent=1 // pred_region
      %2118 = vsyncadd [#allocation4], 0
      %s2120 = sshll.u32 [#allocation16], 4
      %s2121 = int_to_ptr.vmem [resolvable:$true] %s2120
      %s2122 = sshll.u32 %s9, 4
      %s2123 = int_to_ptr.hbm [resolvable:$true] %s2122
      %2125 = dma.vmem_to_hbm [thread:$0]  %s2121, 32, %s2123, [#allocation4]
    $region73: #{_fused_forward.1} parent=1 // pred_fallthru
      _
    // Predicated region
    $region74: #{_fused_forward.1} parent=1 // pred_check
      _
    $region75: #{_fused_forward.1} parent=1 // pred_check_branch
      %2127 = sbr.rel (0) target = $region77
    $region76: #{_fused_forward.1} parent=1 // pred_region
      %2129 = dma.done [#allocation4], 32
    $region77: #{_fused_forward.1} parent=1 // pred_fallthru
      _
    %2130 = vsyncpa [#allocation3], 1
    %2131 = vsyncpa [#allocation6], 1
    %2132 = vsyncpa [#allocation9], 1
    %2133 = vsyncpa [#allocation12], 1
    %2134 = vsyncpa [#allocation15], 1
    %2135 = vsyncpa [#allocation4], 1

</llo_original>
